<compile_context>
chip_gen: v5e
topology: v5e:2x2
jax: 0.10.0
libtpu: 0.0.40
codegen_flags: <defaults>
</compile_context>

<pallas_src>
import functools
import math

import jax
import jax.numpy as jnp
from jax.experimental import pallas as pl
from jax.experimental.pallas import tpu as pltpu


def collab_attn_kernel(x_ref, enc_ref, wq_ref, wkT_ref, wvf_ref, bvf_ref,
                       wcb_ref, mix_ref, out_ref, kT_sc, v_sc, cb_sc,
                       *, approx_recip):
    # x_ref:   (1, tT, D)    query tile of the from-sequence     [matmul dtype]
    # enc_ref: (1, S, D)     full to-sequence (= `key` arg)      [matmul dtype]
    # wq_ref:  (D, Dk)       query projection (no bias)          [matmul dtype]
    # wkT_ref: (Dk, D)       key projection, pre-transposed      [matmul dtype]
    # wvf_ref: (D, H*dh)     value projection, head_mask folded  [matmul dtype]
    # bvf_ref: (1, H*dh)     value bias, head_mask folded        [f32]
    # wcb_ref: (H, D)        content-bias projection, scale folded [matmul dtype]
    # mix_ref: (H, Dk)       per-head mixing vectors, scale folded [f32]
    # out_ref: (1, tT, H*dh) lane-dense context output
    # kT_sc:   (H, Dk, S)    scratch: mixing-folded k^T          (T-invariant, per batch)
    # v_sc:    (H, S, dh)    scratch: projected (masked) values  (T-invariant, per batch)
    # cb_sc:   (H, S)        scratch: scaled content bias        (T-invariant, per batch)
    cdt = wq_ref.dtype                  # MXU operand dtype (f32 or bf16), f32 accumulation
    H, S = cb_sc.shape
    dh = v_sc.shape[-1]

    # ---- per-batch (T-invariant) work, hoisted to the first query tile ----
    @pl.when(pl.program_id(1) == 0)
    def _():
        enc = enc_ref[0]                                          # (S, D)
        # k^T computed directly (no in-kernel transpose): contract last dims.
        kT = jax.lax.dot_general(wkT_ref[...], enc, (((1,), (1,)), ((), ())),
                                 preferred_element_type=jnp.float32)   # (Dk, S)
        # Projected values, one lane-dense (S, D) @ (D, H*dh) matmul; head_mask folded in.
        v = jnp.dot(enc, wvf_ref[...],
                    preferred_element_type=jnp.float32) + bvf_ref[...]  # (S, H*dh)
        # Content bias (softmax scale folded into Wcb): (H, D)·(S, D)^T -> (H, S)
        cb_sc[...] = jax.lax.dot_general(wcb_ref[...], enc, (((1,), (1,)), ((), ())),
                                         preferred_element_type=jnp.float32)
        # Fold the (pre-scaled) per-head mixing into the key scratch once per batch and
        # split values per head so the per-tile loop never lane-slices a flat tensor.
        for h in range(H):
            kT_sc[h] = (mix_ref[h][:, None] * kT).astype(kT_sc.dtype)       # (Dk, S)
            v_sc[h] = v[:, h * dh:(h + 1) * dh].astype(v_sc.dtype)          # (S, dh)

    # ---- per query-tile work ----
    x = x_ref[0]                                                  # (tT, D), matmul dtype
    q = jnp.dot(x, wq_ref[...],
                preferred_element_type=jnp.float32).astype(cdt)   # (tT, Dk)

    for h in range(H):
        # scores for head h: mixing + softmax scale already folded into kT_sc / cb_sc
        s_h = jnp.dot(q, kT_sc[h],
                      preferred_element_type=jnp.float32) + cb_sc[h][None, :]  # (tT, S)
        # stable softmax numerator (f32); normalization deferred past the PV matmul
        m = jnp.max(s_h, axis=-1, keepdims=True)
        e = jnp.exp(s_h - m)                                      # (tT, S) f32
        denom = jnp.sum(e, axis=-1, keepdims=True)                # (tT, 1)
        ctx = jnp.dot(e.astype(cdt), v_sc[h],
                      preferred_element_type=jnp.float32)         # (tT, dh)
        ctx = ctx * pl.reciprocal(denom, approx=approx_recip)     # post-normalize (cheap)
        out_ref[0, :, h * dh:(h + 1) * dh] = ctx.astype(out_ref.dtype)


def _vmem_limit_bytes():
    # Stay below the physical per-TensorCore VMEM (64 MiB on v7x, 128 MiB on v5e/v6e),
    # leaving headroom for compiler-internal scratch and double buffers.
    try:
        cap = pltpu.get_tpu_info().vmem_capacity_bytes
        return int(min(cap * 3 // 4, 96 * 1024 * 1024))
    except Exception:
        return 48 * 1024 * 1024


def args_adapter_distilbert_forward(query, key, value, mask, head_mask, params,
                                    *, t_tile=None, matmul_dtype=jnp.bfloat16,
                                    approx_reciprocal=True, out_dtype=None):
    """Pallas implementation of ArgsAdapterDistilBERT.forward.

    `value` and `mask` are accepted for signature compatibility but are unused:
    the collaborative layer re-projects values from `key` (encoder_hidden_states)
    and the adapter passes attention_mask=None.

    Defaults (bf16 MXU operands, f32 accumulation, approx reciprocal) are the fast
    path for real TPU hardware; pass matmul_dtype=jnp.float32 / approx_reciprocal=False
    for an exact-precision run.
    """
    del value, mask
    B, T, D = query.shape
    _, S, _ = key.shape
    Wq, Wk, Wv, bv, Wcb, mixing = (params["Wq"], params["Wk"], params["Wv"],
                                   params["bv"], params["Wcb"], params["mixing"])
    H, _, dh = Wv.shape
    Dk = Wq.shape[1]
    HD = H * dh
    scale = 1.0 / math.sqrt(Dk / H)
    if out_dtype is None:
        out_dtype = query.dtype

    if head_mask is None:
        head_mask = jnp.ones((H,), jnp.float32)
    hm = head_mask.reshape(H).astype(jnp.float32)

    # Fold per-head scalars into the (tiny) parameter tensors at trace time:
    #   softmax scale -> mixing & content-bias projection
    #   head_mask     -> value projection + bias   (p @ (v*hm) == (p*hm) @ v)
    mixing_s = (mixing * scale).astype(jnp.float32)      # used for a once-per-batch VPU fold
    Wcb_s = (Wcb * scale).astype(matmul_dtype)
    Wv_m = Wv * hm[:, None, None]
    bv_m = bv * hm[:, None]
    # Lane-dense value projection: v = enc @ Wv_flat is one (S, D) @ (D, H*dh) matmul.
    Wv_flat = jnp.transpose(Wv_m, (1, 0, 2)).reshape(D, HD).astype(matmul_dtype)
    bv_flat = bv_m.reshape(1, HD).astype(jnp.float32)

    # MXU operands in matmul precision; Wk pre-transposed so the kernel never transposes.
    Wq_c = Wq.astype(matmul_dtype)
    WkT_c = jnp.transpose(Wk, (1, 0)).astype(matmul_dtype)      # (Dk, D)
    # Activations DMA'd at matmul precision (halves HBM read traffic for the bf16 path).
    q_in = query.astype(matmul_dtype)
    k_in = key.astype(matmul_dtype)

    if t_tile is None:
        # Capped at 128 (v7x VMEM budget); sweep larger values explicitly on v5e/v6e.
        t_tile = next((c for c in (128, 64, 32, 16, 8) if T % c == 0), T)
    assert T % t_tile == 0, "t_tile must divide T"
    nT = T // t_tile

    kernel = functools.partial(collab_attn_kernel, approx_recip=approx_reciprocal)

    # NOTE: the weight inputs are grid-invariant (constant index_map), so Pallas does
    # not re-DMA them across grid steps.
    # TODO(synk): single-buffer the grid-invariant weights (pipeline_mode=pl.Buffered(1))
    # once that path is validated on this jax version (saves a few MB of VMEM on v7x).
    # TODO(synk): for B == 1 on v7x, add a core-parallel split of the query-tile axis so
    # the second TensorCore is not idle (each core re-doing the cheap per-batch k/v/cb work).
    out = pl.pallas_call(
        kernel,
        out_shape=jax.ShapeDtypeStruct((B, T, HD), out_dtype),
        grid_spec=pltpu.PrefetchScalarGridSpec(
            num_scalar_prefetch=0,
            grid=(B, nT),
            in_specs=[
                pl.BlockSpec((1, t_tile, D), lambda b, t: (b, t, 0)),  # query tile
                pl.BlockSpec((1, S, D), lambda b, t: (b, 0, 0)),       # encoder (key)
                pl.BlockSpec((D, Dk), lambda b, t: (0, 0)),            # Wq
                pl.BlockSpec((Dk, D), lambda b, t: (0, 0)),            # Wk^T
                pl.BlockSpec((D, HD), lambda b, t: (0, 0)),            # Wv (flattened, masked)
                pl.BlockSpec((1, HD), lambda b, t: (0, 0)),            # bv (flattened, masked)
                pl.BlockSpec((H, D), lambda b, t: (0, 0)),             # Wcb (pre-scaled)
                pl.BlockSpec((H, Dk), lambda b, t: (0, 0)),            # mixing (pre-scaled)
            ],
            out_specs=pl.BlockSpec((1, t_tile, HD), lambda b, t: (b, t, 0)),
            scratch_shapes=[
                pltpu.VMEM((H, Dk, S), matmul_dtype),   # mixing-folded k^T, per head
                pltpu.VMEM((H, S, dh), matmul_dtype),   # projected (masked) values, per head
                pltpu.VMEM((H, S), jnp.float32),        # scaled content bias
            ],
        ),
        compiler_params=pltpu.CompilerParams(
            dimension_semantics=("parallel", "arbitrary"),
            vmem_limit_bytes=_vmem_limit_bytes(),
        ),
    )(q_in, k_in, Wq_c, WkT_c, Wv_flat, bv_flat, Wcb_s, mixing_s)

    return (out,)


def reference_forward(query, key, head_mask, params):
    """Pure-JAX reference mirroring the PyTorch collaborative attention math."""
    Wq, Wk, Wv, bv, Wcb, mixing = (params["Wq"], params["Wk"], params["Wv"],
                                   params["bv"], params["Wcb"], params["mixing"])
    B, T, D = query.shape
    H, _, dh = Wv.shape
    Dk = Wq.shape[1]
    q = query @ Wq                                                    # (B,T,Dk)
    k = key @ Wk                                                      # (B,S,Dk)
    mixed_q = q[:, None, :, :] * mixing[None, :, None, :]             # (B,H,T,Dk)
    scores = jnp.einsum('bhtd,bsd->bhts', mixed_q, k)
    cb = jnp.einsum('bsd,hd->bhs', key, Wcb)
    scores = scores + cb[:, :, None, :]
    scores = scores / math.sqrt(Dk / H)
    probs = jax.nn.softmax(scores, axis=-1)
    probs = probs * head_mask[None, :, None, None]
    v = jnp.einsum('bsd,hdv->bhsv', key, Wv) + bv[None, :, None, :]
    ctx = jnp.einsum('bhts,bhsv->bhtv', probs, v)
    return jnp.transpose(ctx, (0, 2, 1, 3)).reshape(B, T, H * dh)


if __name__ == "__main__":
    # Small shapes consistent with a DistilBERT-style cross-attention layer.
    # T > S and t_tile < T so the query-tile grid axis and the per-batch hoisting
    # (pl.when(t == 0)) paths are both exercised.
    B, T, S, D, H = 2, 16, 8, 32, 4
    Dk = D          # dim_key_query_all
    dh = D // H     # per-head value dim

    key0 = jax.random.PRNGKey(0)
    ks = jax.random.split(key0, 10)

    params = {
        "Wq": jax.random.normal(ks[0], (D, Dk), jnp.float32) * (1.0 / math.sqrt(D)),
        "Wk": jax.random.normal(ks[1], (D, Dk), jnp.float32) * (1.0 / math.sqrt(D)),
        "Wv": jax.random.normal(ks[2], (H, D, dh), jnp.float32) * (1.0 / math.sqrt(D)),
        "bv": jax.random.normal(ks[3], (H, dh), jnp.float32) * 0.02,
        "Wcb": jax.random.normal(ks[4], (H, D), jnp.float32) * (1.0 / math.sqrt(D)),
        "mixing": jax.random.uniform(ks[5], (H, Dk), jnp.float32),
    }

    query = jax.random.normal(ks[6], (B, T, D), jnp.float32)
    key = jax.random.normal(ks[7], (B, S, D), jnp.float32)
    value = jax.random.normal(ks[8], (B, S, D), jnp.float32)   # ignored by the layer
    mask = jnp.ones((B, S), jnp.float32)                       # ignored (adapter passes None)
    head_mask = jnp.array([1.0, 1.0, 0.0, 1.0], jnp.float32)   # (H,)

    ref = reference_forward(query, key, head_mask, params)

    # Exact-precision run (f32 MXU operands, exact reciprocal). The production default
    # (bf16 operands + approx reciprocal) is the fast path on real TPU hardware but is
    # not exercised here so the script also runs under interpret-mode execution, which
    # lacks bf16 x bf16 -> f32 dot support.
    out = args_adapter_distilbert_forward(
        query, key, value, mask, head_mask, params, t_tile=8,
        matmul_dtype=jnp.float32, approx_reciprocal=False)[0]
    out = jax.block_until_ready(out)
    assert out.shape == (B, T, H * dh)
    assert jnp.allclose(out, ref, rtol=1e-4, atol=1e-4), "kernel mismatch vs reference"

    print("KERNEL_OK")
</pallas_src>

<mosaic_0001>
module attributes {stable_mosaic.version = 11 : i64} {
  func.func @collab_attn_kernel(%arg0: i32, %arg1: i32, %arg2: memref<1x8x32xf32, #tpu.memory_space<vmem>>, %arg3: memref<1x8x32xf32, #tpu.memory_space<vmem>>, %arg4: memref<32x32xf32, #tpu.memory_space<vmem>>, %arg5: memref<32x32xf32, #tpu.memory_space<vmem>>, %arg6: memref<32x32xf32, #tpu.memory_space<vmem>>, %arg7: memref<1x32xf32, #tpu.memory_space<vmem>>, %arg8: memref<4x32xf32, #tpu.memory_space<vmem>>, %arg9: memref<4x32xf32, #tpu.memory_space<vmem>>, %arg10: memref<1x8x32xf32, #tpu.memory_space<vmem>>, %arg11: memref<4x32x8xf32, #tpu.memory_space<vmem>>, %arg12: memref<4x8x8xf32, #tpu.memory_space<vmem>>, %arg13: memref<4x8xf32, #tpu.memory_space<vmem>>) attributes {dimension_semantics = [#tpu.dimension_semantics<parallel>, #tpu.dimension_semantics<arbitrary>], iteration_bounds = array<i64: 2, 2>, scalar_prefetch = 0 : i64, scratch_operands = 3 : i64, tpu.core_type = #tpu.core_type<tc>, window_params = [{transform_indices = @transform_0, window_bounds = array<i64: 1, 8, 32>}, {transform_indices = @transform_1, window_bounds = array<i64: 1, 8, 32>}, {pipeline_mode = #tpu.pipeline_mode<synchronous>, transform_indices = @transform_2, window_bounds = array<i64: 32, 32>}, {pipeline_mode = #tpu.pipeline_mode<synchronous>, transform_indices = @transform_3, window_bounds = array<i64: 32, 32>}, {pipeline_mode = #tpu.pipeline_mode<synchronous>, transform_indices = @transform_4, window_bounds = array<i64: 32, 32>}, {pipeline_mode = #tpu.pipeline_mode<synchronous>, transform_indices = @transform_5, window_bounds = array<i64: 1, 32>}, {pipeline_mode = #tpu.pipeline_mode<synchronous>, transform_indices = @transform_6, window_bounds = array<i64: 4, 32>}, {pipeline_mode = #tpu.pipeline_mode<synchronous>, transform_indices = @transform_7, window_bounds = array<i64: 4, 32>}, {transform_indices = @transform_8, window_bounds = array<i64: 1, 8, 32>}]} {
    %c0_i32 = arith.constant 0 : i32
    %0 = arith.cmpi eq, %arg1, %c0_i32 : i32
    %1 = arith.extui %0 : i1 to i32
    %c0_i32_0 = arith.constant 0 : i32
    %2 = arith.cmpi ne, %1, %c0_i32_0 : i32
    scf.if %2 {
      %c0_59 = arith.constant 0 : index
      %c0_60 = arith.constant 0 : index
      %c0_61 = arith.constant 0 : index
      %103 = vector.load %arg3[%c0_59, %c0_60, %c0_61] : memref<1x8x32xf32, #tpu.memory_space<vmem>>, vector<1x8x32xf32>
      %104 = vector.shape_cast %103 : vector<1x8x32xf32> to vector<8x32xf32>
      %c0_62 = arith.constant 0 : index
      %c0_63 = arith.constant 0 : index
      %105 = vector.load %arg5[%c0_62, %c0_63] : memref<32x32xf32, #tpu.memory_space<vmem>>, vector<32x32xf32>
      %cst_64 = arith.constant dense<0.000000e+00> : vector<32x8xf32>
      %106 = tpu.matmul %105, %104, %cst_64 {dimension_numbers = #tpu.dot_dimension_numbers<[1], [1], [0], [0], [0, 0, 1, 0], [], []>} : vector<32x32xf32>, vector<8x32xf32>, vector<32x8xf32> -> vector<32x8xf32>
      %c0_65 = arith.constant 0 : index
      %c0_66 = arith.constant 0 : index
      %107 = vector.load %arg6[%c0_65, %c0_66] : memref<32x32xf32, #tpu.memory_space<vmem>>, vector<32x32xf32>
      %cst_67 = arith.constant dense<0.000000e+00> : vector<8x32xf32>
      %108 = tpu.matmul %104, %107, %cst_67 {dimension_numbers = #tpu.dot_dimension_numbers<[1], [0], [0], [1], [0, 0, 1, 1], [], []>} : vector<8x32xf32>, vector<32x32xf32>, vector<8x32xf32> -> vector<8x32xf32>
      %c0_68 = arith.constant 0 : index
      %c0_69 = arith.constant 0 : index
      %109 = vector.load %arg7[%c0_68, %c0_69] : memref<1x32xf32, #tpu.memory_space<vmem>>, vector<1x32xf32>
      %110 = vector.broadcast %109 : vector<1x32xf32> to vector<8x32xf32>
      %111 = arith.addf %108, %110 : vector<8x32xf32>
      %c0_70 = arith.constant 0 : index
      %c0_71 = arith.constant 0 : index
      %112 = vector.load %arg8[%c0_70, %c0_71] : memref<4x32xf32, #tpu.memory_space<vmem>>, vector<4x32xf32>
      %cst_72 = arith.constant dense<0.000000e+00> : vector<4x8xf32>
      %113 = tpu.matmul %112, %104, %cst_72 {dimension_numbers = #tpu.dot_dimension_numbers<[1], [1], [0], [0], [0, 0, 1, 0], [], []>} : vector<4x32xf32>, vector<8x32xf32>, vector<4x8xf32> -> vector<4x8xf32>
      %c0_73 = arith.constant 0 : index
      %c0_74 = arith.constant 0 : index
      %114 = vector.load %arg13[%c0_73, %c0_74] : memref<4x8xf32, #tpu.memory_space<vmem>>, vector<4x8xf32>
      tpu.vector_store %arg13[%c0_73, %c0_74], %113 {strides = array<i32>} : memref<4x8xf32, #tpu.memory_space<vmem>>, vector<4x8xf32>,
      %c0_75 = arith.constant 0 : index
      %c0_76 = arith.constant 0 : index
      %115 = vector.load %arg9[%c0_75, %c0_76] : memref<4x32xf32, #tpu.memory_space<vmem>>, vector<1x32xf32>
      %116 = vector.shape_cast %115 : vector<1x32xf32> to vector<32xf32>
      %117 = vector.shape_cast %116 : vector<32xf32> to vector<32x1xf32>
      %118 = vector.broadcast %117 : vector<32x1xf32> to vector<32x8xf32>
      %119 = arith.mulf %118, %106 : vector<32x8xf32>
      %c0_77 = arith.constant 0 : index
      %c0_78 = arith.constant 0 : index
      %c0_79 = arith.constant 0 : index
      %120 = vector.load %arg11[%c0_77, %c0_78, %c0_79] : memref<4x32x8xf32, #tpu.memory_space<vmem>>, vector<1x32x8xf32>
      %121 = vector.shape_cast %120 : vector<1x32x8xf32> to vector<32x8xf32>
      %122 = vector.shape_cast %119 : vector<32x8xf32> to vector<1x32x8xf32>
      tpu.vector_store %arg11[%c0_77, %c0_78, %c0_79], %122 {strides = array<i32>} : memref<4x32x8xf32, #tpu.memory_space<vmem>>, vector<1x32x8xf32>,
      %123 = vector.extract_strided_slice %111 {offsets = [0, 0], sizes = [8, 8], strides = [1, 1]} : vector<8x32xf32> to vector<8x8xf32>
      %c0_80 = arith.constant 0 : index
      %c0_81 = arith.constant 0 : index
      %c0_82 = arith.constant 0 : index
      %124 = vector.load %arg12[%c0_80, %c0_81, %c0_82] : memref<4x8x8xf32, #tpu.memory_space<vmem>>, vector<1x8x8xf32>
      %125 = vector.shape_cast %124 : vector<1x8x8xf32> to vector<8x8xf32>
      %126 = vector.shape_cast %123 : vector<8x8xf32> to vector<1x8x8xf32>
      tpu.vector_store %arg12[%c0_80, %c0_81, %c0_82], %126 {strides = array<i32>} : memref<4x8x8xf32, #tpu.memory_space<vmem>>, vector<1x8x8xf32>,
      %c1_83 = arith.constant 1 : index
      %c0_84 = arith.constant 0 : index
      %127 = vector.load %arg9[%c1_83, %c0_84] : memref<4x32xf32, #tpu.memory_space<vmem>>, vector<1x32xf32>
      %128 = vector.shape_cast %127 : vector<1x32xf32> to vector<32xf32>
      %129 = vector.shape_cast %128 : vector<32xf32> to vector<32x1xf32>
      %130 = vector.broadcast %129 : vector<32x1xf32> to vector<32x8xf32>
      %131 = arith.mulf %130, %106 : vector<32x8xf32>
      %c1_85 = arith.constant 1 : index
      %c0_86 = arith.constant 0 : index
      %c0_87 = arith.constant 0 : index
      %132 = vector.load %arg11[%c1_85, %c0_86, %c0_87] : memref<4x32x8xf32, #tpu.memory_space<vmem>>, vector<1x32x8xf32>
      %133 = vector.shape_cast %132 : vector<1x32x8xf32> to vector<32x8xf32>
      %134 = vector.shape_cast %131 : vector<32x8xf32> to vector<1x32x8xf32>
      tpu.vector_store %arg11[%c1_85, %c0_86, %c0_87], %134 {strides = array<i32>} : memref<4x32x8xf32, #tpu.memory_space<vmem>>, vector<1x32x8xf32>,
      %135 = vector.extract_strided_slice %111 {offsets = [0, 8], sizes = [8, 8], strides = [1, 1]} : vector<8x32xf32> to vector<8x8xf32>
      %c1_88 = arith.constant 1 : index
      %c0_89 = arith.constant 0 : index
      %c0_90 = arith.constant 0 : index
      %136 = vector.load %arg12[%c1_88, %c0_89, %c0_90] : memref<4x8x8xf32, #tpu.memory_space<vmem>>, vector<1x8x8xf32>
      %137 = vector.shape_cast %136 : vector<1x8x8xf32> to vector<8x8xf32>
      %138 = vector.shape_cast %135 : vector<8x8xf32> to vector<1x8x8xf32>
      tpu.vector_store %arg12[%c1_88, %c0_89, %c0_90], %138 {strides = array<i32>} : memref<4x8x8xf32, #tpu.memory_space<vmem>>, vector<1x8x8xf32>,
      %c2_91 = arith.constant 2 : index
      %c0_92 = arith.constant 0 : index
      %139 = vector.load %arg9[%c2_91, %c0_92] : memref<4x32xf32, #tpu.memory_space<vmem>>, vector<1x32xf32>
      %140 = vector.shape_cast %139 : vector<1x32xf32> to vector<32xf32>
      %141 = vector.shape_cast %140 : vector<32xf32> to vector<32x1xf32>
      %142 = vector.broadcast %141 : vector<32x1xf32> to vector<32x8xf32>
      %143 = arith.mulf %142, %106 : vector<32x8xf32>
      %c2_93 = arith.constant 2 : index
      %c0_94 = arith.constant 0 : index
      %c0_95 = arith.constant 0 : index
      %144 = vector.load %arg11[%c2_93, %c0_94, %c0_95] : memref<4x32x8xf32, #tpu.memory_space<vmem>>, vector<1x32x8xf32>
      %145 = vector.shape_cast %144 : vector<1x32x8xf32> to vector<32x8xf32>
      %146 = vector.shape_cast %143 : vector<32x8xf32> to vector<1x32x8xf32>
      tpu.vector_store %arg11[%c2_93, %c0_94, %c0_95], %146 {strides = array<i32>} : memref<4x32x8xf32, #tpu.memory_space<vmem>>, vector<1x32x8xf32>,
      %147 = vector.extract_strided_slice %111 {offsets = [0, 16], sizes = [8, 8], strides = [1, 1]} : vector<8x32xf32> to vector<8x8xf32>
      %c2_96 = arith.constant 2 : index
      %c0_97 = arith.constant 0 : index
      %c0_98 = arith.constant 0 : index
      %148 = vector.load %arg12[%c2_96, %c0_97, %c0_98] : memref<4x8x8xf32, #tpu.memory_space<vmem>>, vector<1x8x8xf32>
      %149 = vector.shape_cast %148 : vector<1x8x8xf32> to vector<8x8xf32>
      %150 = vector.shape_cast %147 : vector<8x8xf32> to vector<1x8x8xf32>
      tpu.vector_store %arg12[%c2_96, %c0_97, %c0_98], %150 {strides = array<i32>} : memref<4x8x8xf32, #tpu.memory_space<vmem>>, vector<1x8x8xf32>,
      %c3_99 = arith.constant 3 : index
      %c0_100 = arith.constant 0 : index
      %151 = vector.load %arg9[%c3_99, %c0_100] : memref<4x32xf32, #tpu.memory_space<vmem>>, vector<1x32xf32>
      %152 = vector.shape_cast %151 : vector<1x32xf32> to vector<32xf32>
      %153 = vector.shape_cast %152 : vector<32xf32> to vector<32x1xf32>
      %154 = vector.broadcast %153 : vector<32x1xf32> to vector<32x8xf32>
      %155 = arith.mulf %154, %106 : vector<32x8xf32>
      %c3_101 = arith.constant 3 : index
      %c0_102 = arith.constant 0 : index
      %c0_103 = arith.constant 0 : index
      %156 = vector.load %arg11[%c3_101, %c0_102, %c0_103] : memref<4x32x8xf32, #tpu.memory_space<vmem>>, vector<1x32x8xf32>
      %157 = vector.shape_cast %156 : vector<1x32x8xf32> to vector<32x8xf32>
      %158 = vector.shape_cast %155 : vector<32x8xf32> to vector<1x32x8xf32>
      tpu.vector_store %arg11[%c3_101, %c0_102, %c0_103], %158 {strides = array<i32>} : memref<4x32x8xf32, #tpu.memory_space<vmem>>, vector<1x32x8xf32>,
      %159 = vector.extract_strided_slice %111 {offsets = [0, 24], sizes = [8, 8], strides = [1, 1]} : vector<8x32xf32> to vector<8x8xf32>
      %c3_104 = arith.constant 3 : index
      %c0_105 = arith.constant 0 : index
      %c0_106 = arith.constant 0 : index
      %160 = vector.load %arg12[%c3_104, %c0_105, %c0_106] : memref<4x8x8xf32, #tpu.memory_space<vmem>>, vector<1x8x8xf32>
      %161 = vector.shape_cast %160 : vector<1x8x8xf32> to vector<8x8xf32>
      %162 = vector.shape_cast %159 : vector<8x8xf32> to vector<1x8x8xf32>
      tpu.vector_store %arg12[%c3_104, %c0_105, %c0_106], %162 {strides = array<i32>} : memref<4x8x8xf32, #tpu.memory_space<vmem>>, vector<1x8x8xf32>,
    } else {
    }
    %c0 = arith.constant 0 : index
    %c0_1 = arith.constant 0 : index
    %c0_2 = arith.constant 0 : index
    %3 = vector.load %arg2[%c0, %c0_1, %c0_2] : memref<1x8x32xf32, #tpu.memory_space<vmem>>, vector<1x8x32xf32>
    %4 = vector.shape_cast %3 : vector<1x8x32xf32> to vector<8x32xf32>
    %c0_3 = arith.constant 0 : index
    %c0_4 = arith.constant 0 : index
    %5 = vector.load %arg4[%c0_3, %c0_4] : memref<32x32xf32, #tpu.memory_space<vmem>>, vector<32x32xf32>
    %cst = arith.constant dense<0.000000e+00> : vector<8x32xf32>
    %6 = tpu.matmul %4, %5, %cst {dimension_numbers = #tpu.dot_dimension_numbers<[1], [0], [0], [1], [0, 0, 1, 1], [], []>} : vector<8x32xf32>, vector<32x32xf32>, vector<8x32xf32> -> vector<8x32xf32>
    %c0_5 = arith.constant 0 : index
    %c0_6 = arith.constant 0 : index
    %c0_7 = arith.constant 0 : index
    %7 = vector.load %arg11[%c0_5, %c0_6, %c0_7] : memref<4x32x8xf32, #tpu.memory_space<vmem>>, vector<1x32x8xf32>
    %8 = vector.shape_cast %7 : vector<1x32x8xf32> to vector<32x8xf32>
    %cst_8 = arith.constant dense<0.000000e+00> : vector<8x8xf32>
    %9 = tpu.matmul %6, %8, %cst_8 {dimension_numbers = #tpu.dot_dimension_numbers<[1], [0], [0], [1], [0, 0, 1, 1], [], []>} : vector<8x32xf32>, vector<32x8xf32>, vector<8x8xf32> -> vector<8x8xf32>
    %c0_9 = arith.constant 0 : index
    %c0_10 = arith.constant 0 : index
    %10 = vector.load %arg13[%c0_9, %c0_10] : memref<4x8xf32, #tpu.memory_space<vmem>>, vector<1x8xf32>
    %11 = vector.shape_cast %10 : vector<1x8xf32> to vector<8xf32>
    %12 = vector.shape_cast %11 : vector<8xf32> to vector<1x8xf32>
    %13 = vector.broadcast %12 : vector<1x8xf32> to vector<8x8xf32>
    %14 = arith.addf %9, %13 : vector<8x8xf32>
    %cst_11 = arith.constant dense<0xFF800000> : vector<8xf32>
    %15 = vector.multi_reduction <maximumf>, %14, %cst_11 [1] : vector<8x8xf32> to vector<8xf32>
    %16 = vector.shape_cast %15 : vector<8xf32> to vector<8x1xf32>
    %17 = vector.broadcast %16 : vector<8x1xf32> to vector<8x8xf32>
    %18 = arith.subf %14, %17 : vector<8x8xf32>
    %19 = math.exp %18 : vector<8x8xf32>
    %cst_12 = arith.constant dense<0.000000e+00> : vector<8xf32>
    %20 = vector.multi_reduction <add>, %19, %cst_12 [1] : vector<8x8xf32> to vector<8xf32>
    %21 = vector.shape_cast %20 : vector<8xf32> to vector<8x1xf32>
    %c0_13 = arith.constant 0 : index
    %c0_14 = arith.constant 0 : index
    %c0_15 = arith.constant 0 : index
    %22 = vector.load %arg12[%c0_13, %c0_14, %c0_15] : memref<4x8x8xf32, #tpu.memory_space<vmem>>, vector<1x8x8xf32>
    %23 = vector.shape_cast %22 : vector<1x8x8xf32> to vector<8x8xf32>
    %cst_16 = arith.constant dense<0.000000e+00> : vector<8x8xf32>
    %24 = tpu.matmul %19, %23, %cst_16 {dimension_numbers = #tpu.dot_dimension_numbers<[1], [0], [0], [1], [0, 0, 1, 1], [], []>} : vector<8x8xf32>, vector<8x8xf32>, vector<8x8xf32> -> vector<8x8xf32>
    %25 = tpu.reciprocal %21 : vector<8x1xf32> -> vector<8x1xf32>
    %26 = vector.broadcast %25 : vector<8x1xf32> to vector<8x8xf32>
    %27 = arith.mulf %24, %26 : vector<8x8xf32>
    %c0_17 = arith.constant 0 : index
    %c0_18 = arith.constant 0 : index
    %c0_19 = arith.constant 0 : index
    %28 = vector.load %arg10[%c0_17, %c0_18, %c0_19] : memref<1x8x32xf32, #tpu.memory_space<vmem>>, vector<1x8x8xf32>
    %29 = vector.shape_cast %28 : vector<1x8x8xf32> to vector<8x8xf32>
    %30 = vector.shape_cast %27 : vector<8x8xf32> to vector<1x8x8xf32>
    tpu.vector_store %arg10[%c0_17, %c0_18, %c0_19], %30 {strides = array<i32>} : memref<1x8x32xf32, #tpu.memory_space<vmem>>, vector<1x8x8xf32>,
    %c1 = arith.constant 1 : index
    %c0_20 = arith.constant 0 : index
    %c0_21 = arith.constant 0 : index
    %31 = vector.load %arg11[%c1, %c0_20, %c0_21] : memref<4x32x8xf32, #tpu.memory_space<vmem>>, vector<1x32x8xf32>
    %32 = vector.shape_cast %31 : vector<1x32x8xf32> to vector<32x8xf32>
    %cst_22 = arith.constant dense<0.000000e+00> : vector<8x8xf32>
    %33 = tpu.matmul %6, %32, %cst_22 {dimension_numbers = #tpu.dot_dimension_numbers<[1], [0], [0], [1], [0, 0, 1, 1], [], []>} : vector<8x32xf32>, vector<32x8xf32>, vector<8x8xf32> -> vector<8x8xf32>
    %c1_23 = arith.constant 1 : index
    %c0_24 = arith.constant 0 : index
    %34 = vector.load %arg13[%c1_23, %c0_24] : memref<4x8xf32, #tpu.memory_space<vmem>>, vector<1x8xf32>
    %35 = vector.shape_cast %34 : vector<1x8xf32> to vector<8xf32>
    %36 = vector.shape_cast %35 : vector<8xf32> to vector<1x8xf32>
    %37 = vector.broadcast %36 : vector<1x8xf32> to vector<8x8xf32>
    %38 = arith.addf %33, %37 : vector<8x8xf32>
    %cst_25 = arith.constant dense<0xFF800000> : vector<8xf32>
    %39 = vector.multi_reduction <maximumf>, %38, %cst_25 [1] : vector<8x8xf32> to vector<8xf32>
    %40 = vector.shape_cast %39 : vector<8xf32> to vector<8x1xf32>
    %41 = vector.broadcast %40 : vector<8x1xf32> to vector<8x8xf32>
    %42 = arith.subf %38, %41 : vector<8x8xf32>
    %43 = math.exp %42 : vector<8x8xf32>
    %cst_26 = arith.constant dense<0.000000e+00> : vector<8xf32>
    %44 = vector.multi_reduction <add>, %43, %cst_26 [1] : vector<8x8xf32> to vector<8xf32>
    %45 = vector.shape_cast %44 : vector<8xf32> to vector<8x1xf32>
    %c1_27 = arith.constant 1 : index
    %c0_28 = arith.constant 0 : index
    %c0_29 = arith.constant 0 : index
    %46 = vector.load %arg12[%c1_27, %c0_28, %c0_29] : memref<4x8x8xf32, #tpu.memory_space<vmem>>, vector<1x8x8xf32>
    %47 = vector.shape_cast %46 : vector<1x8x8xf32> to vector<8x8xf32>
    %cst_30 = arith.constant dense<0.000000e+00> : vector<8x8xf32>
    %48 = tpu.matmul %43, %47, %cst_30 {dimension_numbers = #tpu.dot_dimension_numbers<[1], [0], [0], [1], [0, 0, 1, 1], [], []>} : vector<8x8xf32>, vector<8x8xf32>, vector<8x8xf32> -> vector<8x8xf32>
    %49 = tpu.reciprocal %45 : vector<8x1xf32> -> vector<8x1xf32>
    %50 = vector.broadcast %49 : vector<8x1xf32> to vector<8x8xf32>
    %51 = arith.mulf %48, %50 : vector<8x8xf32>
    %c0_31 = arith.constant 0 : index
    %c0_32 = arith.constant 0 : index
    %c8 = arith.constant 8 : index
    %52 = vector.load %arg10[%c0_31, %c0_32, %c8] : memref<1x8x32xf32, #tpu.memory_space<vmem>>, vector<1x8x8xf32>
    %53 = vector.shape_cast %52 : vector<1x8x8xf32> to vector<8x8xf32>
    %54 = vector.shape_cast %51 : vector<8x8xf32> to vector<1x8x8xf32>
    tpu.vector_store %arg10[%c0_31, %c0_32, %c8], %54 {strides = array<i32>} : memref<1x8x32xf32, #tpu.memory_space<vmem>>, vector<1x8x8xf32>,
    %c2 = arith.constant 2 : index
    %c0_33 = arith.constant 0 : index
    %c0_34 = arith.constant 0 : index
    %55 = vector.load %arg11[%c2, %c0_33, %c0_34] : memref<4x32x8xf32, #tpu.memory_space<vmem>>, vector<1x32x8xf32>
    %56 = vector.shape_cast %55 : vector<1x32x8xf32> to vector<32x8xf32>
    %cst_35 = arith.constant dense<0.000000e+00> : vector<8x8xf32>
    %57 = tpu.matmul %6, %56, %cst_35 {dimension_numbers = #tpu.dot_dimension_numbers<[1], [0], [0], [1], [0, 0, 1, 1], [], []>} : vector<8x32xf32>, vector<32x8xf32>, vector<8x8xf32> -> vector<8x8xf32>
    %c2_36 = arith.constant 2 : index
    %c0_37 = arith.constant 0 : index
    %58 = vector.load %arg13[%c2_36, %c0_37] : memref<4x8xf32, #tpu.memory_space<vmem>>, vector<1x8xf32>
    %59 = vector.shape_cast %58 : vector<1x8xf32> to vector<8xf32>
    %60 = vector.shape_cast %59 : vector<8xf32> to vector<1x8xf32>
    %61 = vector.broadcast %60 : vector<1x8xf32> to vector<8x8xf32>
    %62 = arith.addf %57, %61 : vector<8x8xf32>
    %cst_38 = arith.constant dense<0xFF800000> : vector<8xf32>
    %63 = vector.multi_reduction <maximumf>, %62, %cst_38 [1] : vector<8x8xf32> to vector<8xf32>
    %64 = vector.shape_cast %63 : vector<8xf32> to vector<8x1xf32>
    %65 = vector.broadcast %64 : vector<8x1xf32> to vector<8x8xf32>
    %66 = arith.subf %62, %65 : vector<8x8xf32>
    %67 = math.exp %66 : vector<8x8xf32>
    %cst_39 = arith.constant dense<0.000000e+00> : vector<8xf32>
    %68 = vector.multi_reduction <add>, %67, %cst_39 [1] : vector<8x8xf32> to vector<8xf32>
    %69 = vector.shape_cast %68 : vector<8xf32> to vector<8x1xf32>
    %c2_40 = arith.constant 2 : index
    %c0_41 = arith.constant 0 : index
    %c0_42 = arith.constant 0 : index
    %70 = vector.load %arg12[%c2_40, %c0_41, %c0_42] : memref<4x8x8xf32, #tpu.memory_space<vmem>>, vector<1x8x8xf32>
    %71 = vector.shape_cast %70 : vector<1x8x8xf32> to vector<8x8xf32>
    %cst_43 = arith.constant dense<0.000000e+00> : vector<8x8xf32>
    %72 = tpu.matmul %67, %71, %cst_43 {dimension_numbers = #tpu.dot_dimension_numbers<[1], [0], [0], [1], [0, 0, 1, 1], [], []>} : vector<8x8xf32>, vector<8x8xf32>, vector<8x8xf32> -> vector<8x8xf32>
    %73 = tpu.reciprocal %69 : vector<8x1xf32> -> vector<8x1xf32>
    %74 = vector.broadcast %73 : vector<8x1xf32> to vector<8x8xf32>
    %75 = arith.mulf %72, %74 : vector<8x8xf32>
    %c0_44 = arith.constant 0 : index
    %c0_45 = arith.constant 0 : index
    %c16 = arith.constant 16 : index
    %76 = vector.load %arg10[%c0_44, %c0_45, %c16] : memref<1x8x32xf32, #tpu.memory_space<vmem>>, vector<1x8x8xf32>
    %77 = vector.shape_cast %76 : vector<1x8x8xf32> to vector<8x8xf32>
    %78 = vector.shape_cast %75 : vector<8x8xf32> to vector<1x8x8xf32>
    tpu.vector_store %arg10[%c0_44, %c0_45, %c16], %78 {strides = array<i32>} : memref<1x8x32xf32, #tpu.memory_space<vmem>>, vector<1x8x8xf32>,
    %c3 = arith.constant 3 : index
    %c0_46 = arith.constant 0 : index
    %c0_47 = arith.constant 0 : index
    %79 = vector.load %arg11[%c3, %c0_46, %c0_47] : memref<4x32x8xf32, #tpu.memory_space<vmem>>, vector<1x32x8xf32>
    %80 = vector.shape_cast %79 : vector<1x32x8xf32> to vector<32x8xf32>
    %cst_48 = arith.constant dense<0.000000e+00> : vector<8x8xf32>
    %81 = tpu.matmul %6, %80, %cst_48 {dimension_numbers = #tpu.dot_dimension_numbers<[1], [0], [0], [1], [0, 0, 1, 1], [], []>} : vector<8x32xf32>, vector<32x8xf32>, vector<8x8xf32> -> vector<8x8xf32>
    %c3_49 = arith.constant 3 : index
    %c0_50 = arith.constant 0 : index
    %82 = vector.load %arg13[%c3_49, %c0_50] : memref<4x8xf32, #tpu.memory_space<vmem>>, vector<1x8xf32>
    %83 = vector.shape_cast %82 : vector<1x8xf32> to vector<8xf32>
    %84 = vector.shape_cast %83 : vector<8xf32> to vector<1x8xf32>
    %85 = vector.broadcast %84 : vector<1x8xf32> to vector<8x8xf32>
    %86 = arith.addf %81, %85 : vector<8x8xf32>
    %cst_51 = arith.constant dense<0xFF800000> : vector<8xf32>
    %87 = vector.multi_reduction <maximumf>, %86, %cst_51 [1] : vector<8x8xf32> to vector<8xf32>
    %88 = vector.shape_cast %87 : vector<8xf32> to vector<8x1xf32>
    %89 = vector.broadcast %88 : vector<8x1xf32> to vector<8x8xf32>
    %90 = arith.subf %86, %89 : vector<8x8xf32>
    %91 = math.exp %90 : vector<8x8xf32>
    %cst_52 = arith.constant dense<0.000000e+00> : vector<8xf32>
    %92 = vector.multi_reduction <add>, %91, %cst_52 [1] : vector<8x8xf32> to vector<8xf32>
    %93 = vector.shape_cast %92 : vector<8xf32> to vector<8x1xf32>
    %c3_53 = arith.constant 3 : index
    %c0_54 = arith.constant 0 : index
    %c0_55 = arith.constant 0 : index
    %94 = vector.load %arg12[%c3_53, %c0_54, %c0_55] : memref<4x8x8xf32, #tpu.memory_space<vmem>>, vector<1x8x8xf32>
    %95 = vector.shape_cast %94 : vector<1x8x8xf32> to vector<8x8xf32>
    %cst_56 = arith.constant dense<0.000000e+00> : vector<8x8xf32>
    %96 = tpu.matmul %91, %95, %cst_56 {dimension_numbers = #tpu.dot_dimension_numbers<[1], [0], [0], [1], [0, 0, 1, 1], [], []>} : vector<8x8xf32>, vector<8x8xf32>, vector<8x8xf32> -> vector<8x8xf32>
    %97 = tpu.reciprocal %93 : vector<8x1xf32> -> vector<8x1xf32>
    %98 = vector.broadcast %97 : vector<8x1xf32> to vector<8x8xf32>
    %99 = arith.mulf %96, %98 : vector<8x8xf32>
    %c0_57 = arith.constant 0 : index
    %c0_58 = arith.constant 0 : index
    %c24 = arith.constant 24 : index
    %100 = vector.load %arg10[%c0_57, %c0_58, %c24] : memref<1x8x32xf32, #tpu.memory_space<vmem>>, vector<1x8x8xf32>
    %101 = vector.shape_cast %100 : vector<1x8x8xf32> to vector<8x8xf32>
    %102 = vector.shape_cast %99 : vector<8x8xf32> to vector<1x8x8xf32>
    tpu.vector_store %arg10[%c0_57, %c0_58, %c24], %102 {strides = array<i32>} : memref<1x8x32xf32, #tpu.memory_space<vmem>>, vector<1x8x8xf32>,
    return
  }
  func.func @transform_0(%arg0: i32, %arg1: i32) -> (i32, i32, i32) {
    %c0_i32 = arith.constant 0 : i32
    %c0_i32_0 = arith.constant 0 : i32
    return %arg0, %arg1, %c0_i32 : i32, i32, i32
  }
  func.func @transform_1(%arg0: i32, %arg1: i32) -> (i32, i32, i32) {
    %c0_i32 = arith.constant 0 : i32
    %c0_i32_0 = arith.constant 0 : i32
    %c0_i32_1 = arith.constant 0 : i32
    return %arg0, %c0_i32, %c0_i32_0 : i32, i32, i32
  }
  func.func @transform_2(%arg0: i32, %arg1: i32) -> (i32, i32) {
    %c0_i32 = arith.constant 0 : i32
    %c0_i32_0 = arith.constant 0 : i32
    %c0_i32_1 = arith.constant 0 : i32
    return %c0_i32, %c0_i32_0 : i32, i32
  }
  func.func @transform_3(%arg0: i32, %arg1: i32) -> (i32, i32) {
    %c0_i32 = arith.constant 0 : i32
    %c0_i32_0 = arith.constant 0 : i32
    %c0_i32_1 = arith.constant 0 : i32
    return %c0_i32, %c0_i32_0 : i32, i32
  }
  func.func @transform_4(%arg0: i32, %arg1: i32) -> (i32, i32) {
    %c0_i32 = arith.constant 0 : i32
    %c0_i32_0 = arith.constant 0 : i32
    %c0_i32_1 = arith.constant 0 : i32
    return %c0_i32, %c0_i32_0 : i32, i32
  }
  func.func @transform_5(%arg0: i32, %arg1: i32) -> (i32, i32) {
    %c0_i32 = arith.constant 0 : i32
    %c0_i32_0 = arith.constant 0 : i32
    %c0_i32_1 = arith.constant 0 : i32
    return %c0_i32, %c0_i32_0 : i32, i32
  }
  func.func @transform_6(%arg0: i32, %arg1: i32) -> (i32, i32) {
    %c0_i32 = arith.constant 0 : i32
    %c0_i32_0 = arith.constant 0 : i32
    %c0_i32_1 = arith.constant 0 : i32
    return %c0_i32, %c0_i32_0 : i32, i32
  }
  func.func @transform_7(%arg0: i32, %arg1: i32) -> (i32, i32) {
    %c0_i32 = arith.constant 0 : i32
    %c0_i32_0 = arith.constant 0 : i32
    %c0_i32_1 = arith.constant 0 : i32
    return %c0_i32, %c0_i32_0 : i32, i32
  }
  func.func @transform_8(%arg0: i32, %arg1: i32) -> (i32, i32, i32) {
    %c0_i32 = arith.constant 0 : i32
    %c0_i32_0 = arith.constant 0 : i32
    return %arg0, %arg1, %c0_i32 : i32, i32, i32
  }
}

</mosaic_0001>

<llo_original>
// kernel: tpu_custom_call.1
$region0: #{tpu_custom_call.1}
  #allocation0 [shape = 'u32[]', space=smem, size = 0x4, offset = 0x4, fixed_abs, tag = 'smem constant byte address 0x4 - core index']
  #allocation1 [shape = 'u32[72,128]{1,0:T(1,128)}', space=vmem, size = 0x9000, scoped, tag = 'internal scratch']
  #allocation2 [shape = 'f32[4,32,8]{2,1,0:T(8,128)}', space=vmem, size = 0x10000, scoped, tag = 'scratch operand']
  #allocation3 [shape = 'f32[4,8,8]{2,1,0:T(8,128)}', space=vmem, size = 0x4000, scoped, tag = 'scratch operand']
  #allocation4 [shape = 'f32[4,8]{1,0:T(4,128)}', space=vmem, size = 0x800, scoped, tag = 'scratch operand']
  %s0 = inlined_call_operand.hbm [shape: f32[2,16,32], index: 0, kind: input, shape index: {}]
  %s1 = inlined_call_operand.hbm [shape: f32[2,8,32], index: 1, kind: input, shape index: {}]
  %s2 = inlined_call_operand.hbm [shape: f32[32,32], index: 2, kind: input, shape index: {}]
  %s3 = inlined_call_operand.hbm [shape: f32[32,32], index: 3, kind: input, shape index: {}]
  %s4 = inlined_call_operand.hbm [shape: f32[32,32], index: 4, kind: input, shape index: {}]
  %s5 = inlined_call_operand.vmem [shape: f32[1,32], index: 5, kind: input, shape index: {}]
  %s6 = inlined_call_operand.vmem [shape: f32[4,32], index: 6, kind: input, shape index: {}]
  %s7 = inlined_call_operand.hbm [shape: f32[4,32], index: 7, kind: input, shape index: {}]
  %s8 = inlined_call_operand.hbm [shape: f32[2,16,32], index: 8, kind: output, shape index: {}]
  %s9 = sld [smem:[#allocation0]]
  $region93: #{tpu_custom_call.1} parent=0
    _
  %s11 = ssub.s32 1, %s9
  %s12 = scalar_select 0, %s11, %s9
  $region1: #{tpu_custom_call.1} parent=0
    #allocation5 [shape = 'u8[8192]{0}', space=vmem, size = 0x2000, scoped, tag = 'input window, operand 0']
    #allocation6 [shape = 's32[2]{0}', space=sflag, size = 0x8, scoped, tag = 'scoped memory for tpu_custom_call.1']
    #allocation7 [shape = 's32[2]{0}', space=sflag, size = 0x8, scoped, tag = 'scoped memory for tpu_custom_call.1']
    #allocation8 [shape = 'u8[8192]{0}', space=vmem, size = 0x2000, scoped, tag = 'input window, operand 1']
    #allocation9 [shape = 's32[2]{0}', space=sflag, size = 0x8, scoped, tag = 'scoped memory for tpu_custom_call.1']
    #allocation10 [shape = 'u8[16384]{0}', space=vmem, size = 0x4000, scoped, tag = 'input window, operand 2, single buffered']
    #allocation11 [shape = 'u8[16384]{0}', space=vmem, size = 0x4000, scoped, tag = 'input window, operand 3, single buffered']
    #allocation12 [shape = 's32[1]{0}', space=sflag, size = 0x4, scoped, tag = 'scoped memory for tpu_custom_call.1']
    #allocation13 [shape = 'u8[16384]{0}', space=vmem, size = 0x4000, scoped, tag = 'input window, operand 4, single buffered']
    #allocation14 [shape = 'u8[2048]{0}', space=vmem, size = 0x800, scoped, tag = 'input window, operand 7, single buffered']
    #allocation15 [shape = 's32[1]{0}', space=sflag, size = 0x4, scoped, tag = 'scoped memory for tpu_custom_call.1']
    #allocation16 [shape = 'u8[8192]{0}', space=vmem, size = 0x2000, scoped, tag = 'output window, operand 0']
    %13 = vsyncpa [#allocation6], 0
    %s14 = scalar_lea.sflag [#allocation6], 1
    %15 = vsyncpa %s14, 0
    %16 = vsyncpa [#allocation9], 0
    %s17 = scalar_lea.sflag [#allocation9], 1
    %18 = vsyncpa %s17, 0
    %19 = vsyncpa [#allocation12], 0
    %20 = vsyncpa [#allocation15], 0
    %21 = vsyncpa [#allocation7], 0
    %s22 = scalar_lea.sflag [#allocation7], 1
    %23 = vsyncpa %s22, 0
    loop: start=0, step=1, limit=6
    $region2: #{tpu_custom_call.1} parent=1 // loop_pre_header
      _
    $region3: #{tpu_custom_call.1} parent=1 // loop_header
      %s25 = sphi 0, %s29
      %p26 = scmp.ge.s32.totalorder %s25, 6
      %s32 = sphi 0, %s44
      %s33 = sphi 0, %s40
      %s34 = sphi 0, %s32
      %s35 = sphi 0, %s33
      %s36 = sphi 0, %s34
      %s37 = sphi 0, %s35
      %s49 = sphi 0, %s51
      %s52 = sphi 0, %s49
      %s53 = sphi 0, %s52
      %s69 = sphi 0, %s53
      %s75 = sphi 0, %s77
      %s78 = sphi 0, %s75
      %s79 = sphi 0, %s78
      %s95 = sphi 0, %s79
      %s99 = sphi 0, %s99
      %s101 = sphi 0, %s99
      %s102 = sphi 0, %s101
      %s116 = sphi 0, %s102
      %s120 = sphi 0, %s120
      %s122 = sphi 0, %s120
      %s123 = sphi 0, %s122
      %s137 = sphi 0, %s123
      %s141 = sphi 0, %s141
      %s143 = sphi 0, %s141
      %s144 = sphi 0, %s143
      %s158 = sphi 0, %s144
      %s162 = sphi 0, %s162
      %s164 = sphi 0, %s162
      %s165 = sphi 0, %s164
      %s179 = sphi 0, %s165
      %s183 = sphi 0, %s183
      %s185 = sphi 0, %s183
      %s186 = sphi 0, %s185
      %s200 = sphi 0, %s186
      %s204 = sphi 0, %s204
      %s206 = sphi 0, %s204
      %s207 = sphi 0, %s206
      %s221 = sphi 0, %s207
      %s229 = sphi 0, %s231
      %s232 = sphi 0, %s229
      %s233 = sphi 0, %s232
      %s249 = sphi 0, %s233
    $region4: #{tpu_custom_call.1} parent=1 // loop_header_branch
      %28 = sbr.rel (%p26) target = $region8
    $region5: #{tpu_custom_call.1} parent=1 // loop_body
      %s30 = ssub.s32 %s25, 1
      %s31 = ssub.s32 %s25, 2
      %s38 = sadd.s32 1, %s33
      %p39 = scmp.ge.s32.totalorder %s38, 2
      %s40 = scalar_select %p39, 0, %s38
      %s41 = sadd.s32 1, %s32
      %s42 = scalar_select %p39, %s41, %s32
      %p43 = scmp.ge.s32.totalorder %s42, 2
      %s44 = scalar_select %p43, 0, %s42
      %s45 = ssub.s32 %s32, %s44
      %s46 = ssub.s32 %s33, %s40
      %s47 = sor.u32 %s45, %s46
      %p48 = scmp.eq.s32.totalorder %s47, 0
      %s50 = sadd.s32 %s49, 1
      %s51 = scalar_select %p48, %s49, %s50
      %p54 = pneg %p48
      %p55 = scmp.eq.s32.totalorder %s25, 3
      %p56 = por %p54, %p55
      %p57 = scmp.ne.s32.totalorder %s49, %s52
      %p58 = scmp.eq.s32.totalorder %s25, 0
      %p59 = por %p57, %p58
      %p60 = scmp.ne.s32.totalorder %s49, %s52
      %p61 = scmp.eq.s32.totalorder %s30, 3
      %p62 = por %p60, %p61
      %p63 = scmp.ne.s32.totalorder %s52, %s53
      %p64 = scmp.eq.s32.totalorder %s30, 0
      %p65 = por %p63, %p64
      %p66 = scmp.ne.s32.totalorder %s52, %s53
      %p67 = scmp.eq.s32.totalorder %s31, 3
      %p68 = por %p66, %p67
      %p70 = scmp.ne.s32.totalorder %s53, %s69
      %p71 = scmp.eq.s32.totalorder %s31, 0
      %p72 = por %p70, %p71
      %s73 = ssub.s32 %s32, %s44
      %p74 = scmp.eq.s32.totalorder %s73, 0
      %s76 = sadd.s32 %s75, 1
      %s77 = scalar_select %p74, %s75, %s76
      %p80 = pneg %p74
      %p81 = scmp.eq.s32.totalorder %s25, 3
      %p82 = por %p80, %p81
      %p83 = scmp.ne.s32.totalorder %s75, %s78
      %p84 = scmp.eq.s32.totalorder %s25, 0
      %p85 = por %p83, %p84
      %p86 = scmp.ne.s32.totalorder %s75, %s78
      %p87 = scmp.eq.s32.totalorder %s30, 3
      %p88 = por %p86, %p87
      %p89 = scmp.ne.s32.totalorder %s78, %s79
      %p90 = scmp.eq.s32.totalorder %s30, 0
      %p91 = por %p89, %p90
      %p92 = scmp.ne.s32.totalorder %s78, %s79
      %p93 = scmp.eq.s32.totalorder %s31, 3
      %p94 = por %p92, %p93
      %p96 = scmp.ne.s32.totalorder %s79, %s95
      %p97 = scmp.eq.s32.totalorder %s31, 0
      %p98 = por %p96, %p97
      %s100 = sadd.s32 %s99, 1
      %p103 = scmp.eq.s32.totalorder %s25, 3
      %p104 = scmp.ne.s32.totalorder %s99, %s101
      %p105 = scmp.eq.s32.totalorder %s25, 0
      %p106 = por %p104, %p105
      %p107 = scmp.ne.s32.totalorder %s99, %s101
      %p108 = scmp.eq.s32.totalorder %s30, 3
      %p109 = por %p107, %p108
      %p110 = scmp.ne.s32.totalorder %s101, %s102
      %p111 = scmp.eq.s32.totalorder %s30, 0
      %p112 = por %p110, %p111
      %p113 = scmp.ne.s32.totalorder %s101, %s102
      %p114 = scmp.eq.s32.totalorder %s31, 3
      %p115 = por %p113, %p114
      %p117 = scmp.ne.s32.totalorder %s102, %s116
      %p118 = scmp.eq.s32.totalorder %s31, 0
      %p119 = por %p117, %p118
      %s121 = sadd.s32 %s120, 1
      %p124 = scmp.eq.s32.totalorder %s25, 3
      %p125 = scmp.ne.s32.totalorder %s120, %s122
      %p126 = scmp.eq.s32.totalorder %s25, 0
      %p127 = por %p125, %p126
      %p128 = scmp.ne.s32.totalorder %s120, %s122
      %p129 = scmp.eq.s32.totalorder %s30, 3
      %p130 = por %p128, %p129
      %p131 = scmp.ne.s32.totalorder %s122, %s123
      %p132 = scmp.eq.s32.totalorder %s30, 0
      %p133 = por %p131, %p132
      %p134 = scmp.ne.s32.totalorder %s122, %s123
      %p135 = scmp.eq.s32.totalorder %s31, 3
      %p136 = por %p134, %p135
      %p138 = scmp.ne.s32.totalorder %s123, %s137
      %p139 = scmp.eq.s32.totalorder %s31, 0
      %p140 = por %p138, %p139
      %s142 = sadd.s32 %s141, 1
      %p145 = scmp.eq.s32.totalorder %s25, 3
      %p146 = scmp.ne.s32.totalorder %s141, %s143
      %p147 = scmp.eq.s32.totalorder %s25, 0
      %p148 = por %p146, %p147
      %p149 = scmp.ne.s32.totalorder %s141, %s143
      %p150 = scmp.eq.s32.totalorder %s30, 3
      %p151 = por %p149, %p150
      %p152 = scmp.ne.s32.totalorder %s143, %s144
      %p153 = scmp.eq.s32.totalorder %s30, 0
      %p154 = por %p152, %p153
      %p155 = scmp.ne.s32.totalorder %s143, %s144
      %p156 = scmp.eq.s32.totalorder %s31, 3
      %p157 = por %p155, %p156
      %p159 = scmp.ne.s32.totalorder %s144, %s158
      %p160 = scmp.eq.s32.totalorder %s31, 0
      %p161 = por %p159, %p160
      %s163 = sadd.s32 %s162, 1
      %p166 = scmp.eq.s32.totalorder %s25, 3
      %p167 = scmp.ne.s32.totalorder %s162, %s164
      %p168 = scmp.eq.s32.totalorder %s25, 0
      %p169 = por %p167, %p168
      %p170 = scmp.ne.s32.totalorder %s162, %s164
      %p171 = scmp.eq.s32.totalorder %s30, 3
      %p172 = por %p170, %p171
      %p173 = scmp.ne.s32.totalorder %s164, %s165
      %p174 = scmp.eq.s32.totalorder %s30, 0
      %p175 = por %p173, %p174
      %p176 = scmp.ne.s32.totalorder %s164, %s165
      %p177 = scmp.eq.s32.totalorder %s31, 3
      %p178 = por %p176, %p177
      %p180 = scmp.ne.s32.totalorder %s165, %s179
      %p181 = scmp.eq.s32.totalorder %s31, 0
      %p182 = por %p180, %p181
      %s184 = sadd.s32 %s183, 1
      %p187 = scmp.eq.s32.totalorder %s25, 3
      %p188 = scmp.ne.s32.totalorder %s183, %s185
      %p189 = scmp.eq.s32.totalorder %s25, 0
      %p190 = por %p188, %p189
      %p191 = scmp.ne.s32.totalorder %s183, %s185
      %p192 = scmp.eq.s32.totalorder %s30, 3
      %p193 = por %p191, %p192
      %p194 = scmp.ne.s32.totalorder %s185, %s186
      %p195 = scmp.eq.s32.totalorder %s30, 0
      %p196 = por %p194, %p195
      %p197 = scmp.ne.s32.totalorder %s185, %s186
      %p198 = scmp.eq.s32.totalorder %s31, 3
      %p199 = por %p197, %p198
      %p201 = scmp.ne.s32.totalorder %s186, %s200
      %p202 = scmp.eq.s32.totalorder %s31, 0
      %p203 = por %p201, %p202
      %s205 = sadd.s32 %s204, 1
      %p208 = scmp.eq.s32.totalorder %s25, 3
      %p209 = scmp.ne.s32.totalorder %s204, %s206
      %p210 = scmp.eq.s32.totalorder %s25, 0
      %p211 = por %p209, %p210
      %p212 = scmp.ne.s32.totalorder %s204, %s206
      %p213 = scmp.eq.s32.totalorder %s30, 3
      %p214 = por %p212, %p213
      %p215 = scmp.ne.s32.totalorder %s206, %s207
      %p216 = scmp.eq.s32.totalorder %s30, 0
      %p217 = por %p215, %p216
      %p218 = scmp.ne.s32.totalorder %s206, %s207
      %p219 = scmp.eq.s32.totalorder %s31, 3
      %p220 = por %p218, %p219
      %p222 = scmp.ne.s32.totalorder %s207, %s221
      %p223 = scmp.eq.s32.totalorder %s31, 0
      %p224 = por %p222, %p223
      %s225 = ssub.s32 %s32, %s44
      %s226 = ssub.s32 %s33, %s40
      %s227 = sor.u32 %s225, %s226
      %p228 = scmp.eq.s32.totalorder %s227, 0
      %s230 = sadd.s32 %s229, 1
      %s231 = scalar_select %p228, %s229, %s230
      %p234 = pneg %p228
      %p235 = scmp.eq.s32.totalorder %s25, 3
      %p236 = por %p234, %p235
      %p237 = scmp.ne.s32.totalorder %s229, %s232
      %p238 = scmp.eq.s32.totalorder %s25, 0
      %p239 = por %p237, %p238
      %p240 = scmp.ne.s32.totalorder %s229, %s232
      %p241 = scmp.eq.s32.totalorder %s30, 3
      %p242 = por %p240, %p241
      %p243 = scmp.ne.s32.totalorder %s232, %s233
      %p244 = scmp.eq.s32.totalorder %s30, 0
      %p245 = por %p243, %p244
      %p246 = scmp.ne.s32.totalorder %s232, %s233
      %p247 = scmp.eq.s32.totalorder %s31, 3
      %p248 = por %p246, %p247
      %p250 = scmp.ne.s32.totalorder %s233, %s249
      %p251 = scmp.eq.s32.totalorder %s31, 0
      %p252 = por %p250, %p251
      %p253 = scmp.le.s32.totalorder 1, %s25
      %p254 = scmp.lt.s32.totalorder %s25, 5
      %p255 = pnand %p253, %p254
      %p256 = pneg %p255
      // Predicated region
      $region9: #{tpu_custom_call.1} parent=5 // pred_check
        _
      $region10: #{tpu_custom_call.1} parent=5 // pred_check_branch
        %258 = sbr.rel (%p255) target = $region12
      $region11: #{tpu_custom_call.1} parent=5 // pred_region
        %s259 = ssub.s32 %s25, 1
        // Predicated region
        $region13: #{tpu_custom_call.1} parent=11 // pred_check
          %p260 = pneg %p112
        $region14: #{tpu_custom_call.1} parent=11 // pred_check_branch
          %262 = sbr.rel (%p260) target = $region16
        $region15: #{tpu_custom_call.1} parent=11 // pred_region
          %264 = vsyncadd [#allocation9], 0
          %s265 = sshll.u32 %s2, 4
          %s266 = int_to_ptr.hbm [resolvable:$true] %s265
          %s267 = sshll.u32 [#allocation10], 4
          %s268 = int_to_ptr.vmem [resolvable:$true] %s267
          %273 = dma.hbm_to_vmem [thread:$0]  %s266, 512, %s268, [#allocation9], 128, 128, 8
        $region16: #{tpu_custom_call.1} parent=11 // pred_fallthru
          _
        // Predicated region
        $region17: #{tpu_custom_call.1} parent=11 // pred_check
          %p274 = pneg %p133
        $region18: #{tpu_custom_call.1} parent=11 // pred_check_branch
          %276 = sbr.rel (%p274) target = $region20
        $region19: #{tpu_custom_call.1} parent=11 // pred_region
          %278 = vsyncadd [#allocation12], 0
          %s279 = sshll.u32 %s3, 4
          %s280 = int_to_ptr.hbm [resolvable:$true] %s279
          %s281 = sshll.u32 [#allocation11], 4
          %s282 = int_to_ptr.vmem [resolvable:$true] %s281
          %287 = dma.hbm_to_vmem [thread:$0]  %s280, 512, %s282, [#allocation12], 128, 128, 8
        $region20: #{tpu_custom_call.1} parent=11 // pred_fallthru
          _
        // Predicated region
        $region21: #{tpu_custom_call.1} parent=11 // pred_check
          %p288 = pneg %p154
        $region22: #{tpu_custom_call.1} parent=11 // pred_check_branch
          %290 = sbr.rel (%p288) target = $region24
        $region23: #{tpu_custom_call.1} parent=11 // pred_region
          %292 = vsyncadd [#allocation12], 0
          %s293 = sshll.u32 %s4, 4
          %s294 = int_to_ptr.hbm [resolvable:$true] %s293
          %s295 = sshll.u32 [#allocation13], 4
          %s296 = int_to_ptr.vmem [resolvable:$true] %s295
          %301 = dma.hbm_to_vmem [thread:$0]  %s294, 512, %s296, [#allocation12], 128, 128, 8
        $region24: #{tpu_custom_call.1} parent=11 // pred_fallthru
          _
        // Predicated region
        $region25: #{tpu_custom_call.1} parent=11 // pred_check
          %p302 = pneg %p175
        $region26: #{tpu_custom_call.1} parent=11 // pred_check_branch
          %304 = sbr.rel (%p302) target = $region28
        $region27: #{tpu_custom_call.1} parent=11 // pred_region
          _
        $region28: #{tpu_custom_call.1} parent=11 // pred_fallthru
          _
        // Predicated region
        $region29: #{tpu_custom_call.1} parent=11 // pred_check
          %p305 = pneg %p196
        $region30: #{tpu_custom_call.1} parent=11 // pred_check_branch
          %307 = sbr.rel (%p305) target = $region32
        $region31: #{tpu_custom_call.1} parent=11 // pred_region
          _
        $region32: #{tpu_custom_call.1} parent=11 // pred_fallthru
          _
        // Predicated region
        $region33: #{tpu_custom_call.1} parent=11 // pred_check
          %p308 = pneg %p217
        $region34: #{tpu_custom_call.1} parent=11 // pred_check_branch
          %310 = sbr.rel (%p308) target = $region36
        $region35: #{tpu_custom_call.1} parent=11 // pred_region
          %312 = vsyncadd [#allocation15], 0
          %s314 = sshll.u32 %s7, 4
          %s315 = int_to_ptr.hbm [resolvable:$true] %s314
          %s316 = sshll.u32 [#allocation14], 4
          %s317 = int_to_ptr.vmem [resolvable:$true] %s316
          %319 = dma.hbm_to_vmem [thread:$0]  %s315, 64, %s317, [#allocation15]
        $region36: #{tpu_custom_call.1} parent=11 // pred_fallthru
          _
      $region12: #{tpu_custom_call.1} parent=5 // pred_fallthru
        _
      %p320 = scmp.lt.s32.totalorder %s25, 4
      // Predicated region
      $region37: #{tpu_custom_call.1} parent=5 // pred_check
        %p321 = pneg %p320
      $region38: #{tpu_custom_call.1} parent=5 // pred_check_branch
        %323 = sbr.rel (%p321) target = $region40
      $region39: #{tpu_custom_call.1} parent=5 // pred_region
        // Predicated region
        $region41: #{tpu_custom_call.1} parent=39 // pred_check
          %p324 = pneg %p59
        $region42: #{tpu_custom_call.1} parent=39 // pred_check_branch
          %326 = sbr.rel (%p324) target = $region44
        $region43: #{tpu_custom_call.1} parent=39 // pred_region
          %s327 = sand.u32 %s49, 1
          %s328 = scalar_lea.sflag [#allocation6], %s327
          %s329 = sand.u32 %s49, 1
          %s330 = smul.addr %s329, 8
          %s331 = scalar_lea.vmem [#allocation5], %s330
          %333 = vsyncadd %s328, 0
          %s334 = smul.addr %s32, 2
          %s335 = sadd.s32 %s33, %s334
          %s336 = smul.addr %s335, 8
          %s337 = scalar_lea.hbm %s0, %s336
          %s339 = sshll.u32 %s337, 4
          %s340 = int_to_ptr.hbm [resolvable:$true] %s339
          %s341 = sshll.u32 %s331, 4
          %s342 = int_to_ptr.vmem [resolvable:$true] %s341
          %344 = dma.hbm_to_vmem [thread:$0]  %s340, 128, %s342, %s328
        $region44: #{tpu_custom_call.1} parent=39 // pred_fallthru
          _
        // Predicated region
        $region45: #{tpu_custom_call.1} parent=39 // pred_check
          %p345 = pneg %p85
        $region46: #{tpu_custom_call.1} parent=39 // pred_check_branch
          %347 = sbr.rel (%p345) target = $region48
        $region47: #{tpu_custom_call.1} parent=39 // pred_region
          %s348 = sand.u32 %s25, 1
          %s349 = scalar_lea.sflag [#allocation9], %s348
          %s350 = sand.u32 %s75, 1
          %s351 = smul.addr %s350, 8
          %s352 = scalar_lea.vmem [#allocation8], %s351
          %354 = vsyncadd %s349, 0
          %s355 = smul.addr %s32, 8
          %s356 = scalar_lea.hbm %s1, %s355
          %s358 = sshll.u32 %s356, 4
          %s359 = int_to_ptr.hbm [resolvable:$true] %s358
          %s360 = sshll.u32 %s352, 4
          %s361 = int_to_ptr.vmem [resolvable:$true] %s360
          %363 = dma.hbm_to_vmem [thread:$0]  %s359, 128, %s361, %s349
        $region48: #{tpu_custom_call.1} parent=39 // pred_fallthru
          _
      $region40: #{tpu_custom_call.1} parent=5 // pred_fallthru
        _
      %p364 = scmp.le.s32.totalorder 1, %s25
      %p365 = scmp.lt.s32.totalorder %s25, 5
      %p366 = pnand %p364, %p365
      %p367 = pneg %p366
      // Predicated region
      $region49: #{tpu_custom_call.1} parent=5 // pred_check
        _
      $region50: #{tpu_custom_call.1} parent=5 // pred_check_branch
        %369 = sbr.rel (%p366) target = $region52
      $region51: #{tpu_custom_call.1} parent=5 // pred_region
        %s370 = ssub.s32 %s25, 1
        %s371 = sand.u32 %s52, 1
        %s372 = scalar_lea.sflag [#allocation6], %s371
        %s373 = sand.u32 %s52, 1
        %s374 = smul.addr %s373, 8
        %s375 = scalar_lea.vmem [#allocation5], %s374
        // Predicated region
        $region53: #{tpu_custom_call.1} parent=51 // pred_check
          %p376 = pneg %p65
        $region54: #{tpu_custom_call.1} parent=51 // pred_check_branch
          %378 = sbr.rel (%p376) target = $region56
        $region55: #{tpu_custom_call.1} parent=51 // pred_region
          %380 = dma.done %s372, 128
        $region56: #{tpu_custom_call.1} parent=51 // pred_fallthru
          _
        %s381 = sand.u32 %s30, 1
        %s382 = scalar_lea.sflag [#allocation9], %s381
        %s383 = sand.u32 %s78, 1
        %s384 = smul.addr %s383, 8
        %s385 = scalar_lea.vmem [#allocation8], %s384
        // Predicated region
        $region57: #{tpu_custom_call.1} parent=51 // pred_check
          %p386 = pneg %p91
        $region58: #{tpu_custom_call.1} parent=51 // pred_check_branch
          %388 = sbr.rel (%p386) target = $region60
        $region59: #{tpu_custom_call.1} parent=51 // pred_region
          %390 = dma.done %s382, 128
        $region60: #{tpu_custom_call.1} parent=51 // pred_fallthru
          _
        // Predicated region
        $region61: #{tpu_custom_call.1} parent=51 // pred_check
          %p391 = pneg %p112
        $region62: #{tpu_custom_call.1} parent=51 // pred_check_branch
          %393 = sbr.rel (%p391) target = $region64
        $region63: #{tpu_custom_call.1} parent=51 // pred_region
          %395 = dma.done [#allocation9], 512
        $region64: #{tpu_custom_call.1} parent=51 // pred_fallthru
          _
        // Predicated region
        $region65: #{tpu_custom_call.1} parent=51 // pred_check
          %p396 = pneg %p133
        $region66: #{tpu_custom_call.1} parent=51 // pred_check_branch
          %398 = sbr.rel (%p396) target = $region68
        $region67: #{tpu_custom_call.1} parent=51 // pred_region
          %400 = dma.done [#allocation12], 512
        $region68: #{tpu_custom_call.1} parent=51 // pred_fallthru
          _
        // Predicated region
        $region69: #{tpu_custom_call.1} parent=51 // pred_check
          %p401 = pneg %p154
        $region70: #{tpu_custom_call.1} parent=51 // pred_check_branch
          %403 = sbr.rel (%p401) target = $region72
        $region71: #{tpu_custom_call.1} parent=51 // pred_region
          %405 = dma.done [#allocation12], 512
        $region72: #{tpu_custom_call.1} parent=51 // pred_fallthru
          _
        // Predicated region
        $region73: #{tpu_custom_call.1} parent=51 // pred_check
          %p406 = pneg %p217
        $region74: #{tpu_custom_call.1} parent=51 // pred_check_branch
          %408 = sbr.rel (%p406) target = $region76
        $region75: #{tpu_custom_call.1} parent=51 // pred_region
          %410 = dma.done [#allocation15], 64
        $region76: #{tpu_custom_call.1} parent=51 // pred_fallthru
          _
        %s411 = sand.u32 %s52, 1
        %s412 = scalar_lea.sflag [#allocation6], %s411
        %s413 = sand.u32 %s52, 1
        %s414 = smul.addr %s413, 8
        %s415 = scalar_lea.vmem [#allocation5], %s414
        %p416 = pneg %p65
        %p417 = pneg %p62
        %s418 = sand.u32 %s30, 1
        %s419 = scalar_lea.sflag [#allocation9], %s418
        %s420 = sand.u32 %s78, 1
        %s421 = smul.addr %s420, 8
        %s422 = scalar_lea.vmem [#allocation8], %s421
        %p423 = pneg %p91
        %p424 = pneg %p88
        %p425 = pneg %p112
        %p426 = pneg %p109
        %p427 = pneg %p133
        %p428 = pneg %p130
        %p429 = pneg %p154
        %p430 = pneg %p151
        %p431 = pneg %p175
        %p432 = pneg %p172
        %p433 = pneg %p196
        %p434 = pneg %p193
        %p435 = pneg %p217
        %p436 = pneg %p214
        %p437 = pneg %p245
        %p438 = pneg %p242
        %s439 = sand.u32 %s232, 1
        %s440 = scalar_lea.sflag [#allocation7], %s439
        %s441 = sand.u32 %s232, 1
        %s442 = smul.addr %s441, 8
        %s443 = scalar_lea.vmem [#allocation16], %s442
        %p444 = scmp.eq.s32.totalorder %s35, 0
        // Predicated region
        $region77: #{tpu_custom_call.1} parent=51 // pred_check
          %p445 = pneg %p444
        $region78: #{tpu_custom_call.1} parent=51 // pred_check_branch
          %447 = sbr.rel (%p445) target = $region80
        $region79: #{tpu_custom_call.1} parent=51 // pred_region
          %v448 = vld [vmem:[%s385] sm:$0xff]
          %v449 = vld [vmem:[#allocation11] sm:$0xff]
          %v450 = vld [vmem:[#allocation11 + $0x8] sm:$0xff]
          %v451 = vld [vmem:[#allocation11 + $0x10] sm:$0xff]
          %v452 = vld [vmem:[#allocation11 + $0x18] sm:$0xff]
          %vm453 = vcmask 261120
          %v455 = vsel %vm453, %v449, 0
          %v458 = vsel %vm453, %v450, 0
          %v461 = vsel %vm453, %v451, 0
          %v464 = vsel %vm453, %v452, 0
          %v467 = vsel %vm453, %v448, 0
          %469 = vmatpush.xpose.msra.mxu0 0.0
          %470 = vmatpush.xpose.msra.mxu0 0.0
          %471 = vmatpush.xpose.msra.mxu0 0.0
          %472 = vmatpush.xpose.msra.mxu0 0.0
          %473 = vmatpush.xpose.msra.mxu0 0.0
          %474 = vmatpush.xpose.msra.mxu0 0.0
          %475 = vmatpush.xpose.msra.mxu0 0.0
          %476 = vmatpush.xpose.msra.mxu0 0.0
          %477 = vmatpush.xpose.msra.mxu0 0.0
          %478 = vmatpush.xpose.msra.mxu0 0.0
          %479 = vmatpush.xpose.msra.mxu0 0.0
          %480 = vmatpush.xpose.msra.mxu0 0.0
          %481 = vmatpush.xpose.msra.mxu0 0.0
          %482 = vmatpush.xpose.msra.mxu0 0.0
          %483 = vmatpush.xpose.msra.mxu0 0.0
          %484 = vmatpush.xpose.msra.mxu0 %v467
          %485 = vmatmul.f32.gmra.mxu0 %v455
          %v486 = vpop.f32.mrf.mxu0
          %v487 = vadd.f32 0.0, %v486
          %488 = vmatmul.f32.gmra.mxu0 %v458
          %v489 = vpop.f32.mrf.mxu0
          %v490 = vadd.f32 0.0, %v489
          %491 = vmatmul.f32.gmra.mxu0 %v461
          %v492 = vpop.f32.mrf.mxu0
          %v493 = vadd.f32 0.0, %v492
          %494 = vmatmul.f32.gmra.mxu0 %v464
          %v495 = vpop.f32.mrf.mxu0
          %v496 = vadd.f32 0.0, %v495
          %497 = vdwg.mxu0
          %v498 = vld [vmem:[#allocation13] sm:$0xff]
          %v499 = vld [vmem:[#allocation13 + $0x8] sm:$0xff]
          %v500 = vld [vmem:[#allocation13 + $0x10] sm:$0xff]
          %v501 = vld [vmem:[#allocation13 + $0x18] sm:$0xff]
          %v502 = vld [vmem:[%s5] sm:$0x1]
          %v504 = vperm.slane %v502, 0
          %506 = vmatpush.msra.mxu0 0.0
          %507 = vmatpush.msra.mxu0 0.0
          %508 = vmatpush.msra.mxu0 0.0
          %509 = vmatpush.msra.mxu0 0.0
          %510 = vmatpush.msra.mxu0 0.0
          %511 = vmatpush.msra.mxu0 0.0
          %512 = vmatpush.msra.mxu0 0.0
          %513 = vmatpush.msra.mxu0 0.0
          %514 = vmatpush.msra.mxu0 0.0
          %515 = vmatpush.msra.mxu0 0.0
          %516 = vmatpush.msra.mxu0 0.0
          %517 = vmatpush.msra.mxu0 0.0
          %518 = vmatpush.msra.mxu0 %v501
          %519 = vmatpush.msra.mxu0 %v500
          %520 = vmatpush.msra.mxu0 %v499
          %521 = vmatpush.msra.mxu0 %v498
          %522 = vmatmul.f32.gmra.mxu0 %v467
          %v523 = vpop.f32.mrf.mxu0
          %v524 = vadd.f32 %v504, %v523
          %525 = vdwg.mxu0
          %v526 = vld [vmem:[%s6] sm:$0xf]
          %v528 = vsel %vm453, %v526, 0
          %530 = vmatpush.xpose.msra.mxu0 0.0
          %531 = vmatpush.xpose.msra.mxu0 0.0
          %532 = vmatpush.xpose.msra.mxu0 0.0
          %533 = vmatpush.xpose.msra.mxu0 0.0
          %534 = vmatpush.xpose.msra.mxu0 0.0
          %535 = vmatpush.xpose.msra.mxu0 0.0
          %536 = vmatpush.xpose.msra.mxu0 0.0
          %537 = vmatpush.xpose.msra.mxu0 0.0
          %538 = vmatpush.xpose.msra.mxu0 0.0
          %539 = vmatpush.xpose.msra.mxu0 0.0
          %540 = vmatpush.xpose.msra.mxu0 0.0
          %541 = vmatpush.xpose.msra.mxu0 0.0
          %542 = vmatpush.xpose.msra.mxu0 0.0
          %543 = vmatpush.xpose.msra.mxu0 0.0
          %544 = vmatpush.xpose.msra.mxu0 0.0
          %545 = vmatpush.xpose.msra.mxu0 %v467
          %546 = vmatmul.f32.gmra.mxu0 %v528
          %v547 = vpop.f32.mrf.mxu0
          %v548 = vadd.f32 0.0, %v547
          %549 = vdwg.mxu0
          %vm550 = vcmask 60416
          %551 = vst.msk [vmem:[#allocation4] sm:$0xf] %vm550, %v548
          %v552 = vld [vmem:[#allocation14] sm:$0x1]
          %v553 = vperm.slane %v552, 0
          %v554 = vlaneseq
          %v555 = vshrl.u32 %v554, 7
          %557 = vset.pattern.permute.xlu0 %v555
          %558 = vperm.xlu0 %557, %v553
          %v559 = vpop.permute.xlu0 %558
          %v560 = vlaneseq
          %v561 = vshrl.u32 %v560, 7
          %v562 = vadd.s32 %v561, 8
          %563 = vset.pattern.permute.xlu0 %v562
          %564 = vperm.xlu0 %563, %v553
          %v565 = vpop.permute.xlu0 %564
          %v566 = vlaneseq
          %v567 = vshrl.u32 %v566, 7
          %v568 = vadd.s32 %v567, 16
          %569 = vset.pattern.permute.xlu0 %v568
          %570 = vperm.xlu0 %569, %v553
          %v571 = vpop.permute.xlu0 %570
          %v572 = vlaneseq
          %v573 = vshrl.u32 %v572, 7
          %v574 = vadd.s32 %v573, 24
          %575 = vset.pattern.permute.xlu0 %v574
          %576 = vperm.xlu0 %575, %v553
          %v577 = vpop.permute.xlu0 %576
          %v578 = vmul.f32 %v559, %v487
          %v579 = vmul.f32 %v565, %v490
          %v580 = vmul.f32 %v571, %v493
          %v581 = vmul.f32 %v577, %v496
          %vm582 = vcmask 64512
          %583 = vst.msk [vmem:[#allocation2] sm:$0xff] %vm582, %v578
          %584 = vst.msk [vmem:[#allocation2 + $0x8] sm:$0xff] %vm582, %v579
          %585 = vst.msk [vmem:[#allocation2 + $0x10] sm:$0xff] %vm582, %v580
          %586 = vst.msk [vmem:[#allocation2 + $0x18] sm:$0xff] %vm582, %v581
          %587 = vst.msk [vmem:[#allocation3] sm:$0xff] %vm582, %v524
          %v588 = vld [vmem:[#allocation14 + $0x1] sm:$0x1]
          %v589 = vperm.slane %v588, 0
          %v590 = vlaneseq
          %v591 = vshrl.u32 %v590, 7
          %593 = vset.pattern.permute.xlu0 %v591
          %594 = vperm.xlu0 %593, %v589
          %v595 = vpop.permute.xlu0 %594
          %v596 = vlaneseq
          %v597 = vshrl.u32 %v596, 7
          %v598 = vadd.s32 %v597, 8
          %599 = vset.pattern.permute.xlu0 %v598
          %600 = vperm.xlu0 %599, %v589
          %v601 = vpop.permute.xlu0 %600
          %v602 = vlaneseq
          %v603 = vshrl.u32 %v602, 7
          %v604 = vadd.s32 %v603, 16
          %605 = vset.pattern.permute.xlu0 %v604
          %606 = vperm.xlu0 %605, %v589
          %v607 = vpop.permute.xlu0 %606
          %v608 = vlaneseq
          %v609 = vshrl.u32 %v608, 7
          %v610 = vadd.s32 %v609, 24
          %611 = vset.pattern.permute.xlu0 %v610
          %612 = vperm.xlu0 %611, %v589
          %v613 = vpop.permute.xlu0 %612
          %v614 = vmul.f32 %v595, %v487
          %v615 = vmul.f32 %v601, %v490
          %v616 = vmul.f32 %v607, %v493
          %v617 = vmul.f32 %v613, %v496
          %s618 = scalar_lea.vmem [#allocation2], 32
          %619 = vst.msk [vmem:[%s618] sm:$0xff] %vm582, %v614
          %620 = vst.msk [vmem:[%s618 + $0x8] sm:$0xff] %vm582, %v615
          %621 = vst.msk [vmem:[%s618 + $0x10] sm:$0xff] %vm582, %v616
          %622 = vst.msk [vmem:[%s618 + $0x18] sm:$0xff] %vm582, %v617
          %624 = vrot.lane.b32.xlu0 %v524, 120
          %v625 = vpop.permute.xlu0 %624
          %s627 = scalar_lea.vmem [#allocation3], 8
          %628 = vst.msk [vmem:[%s627] sm:$0xff] %vm582, %v625
          %v629 = vld [vmem:[#allocation14 + $0x2] sm:$0x1]
          %v630 = vperm.slane %v629, 0
          %v631 = vlaneseq
          %v632 = vshrl.u32 %v631, 7
          %634 = vset.pattern.permute.xlu0 %v632
          %635 = vperm.xlu0 %634, %v630
          %v636 = vpop.permute.xlu0 %635
          %v637 = vlaneseq
          %v638 = vshrl.u32 %v637, 7
          %v639 = vadd.s32 %v638, 8
          %640 = vset.pattern.permute.xlu0 %v639
          %641 = vperm.xlu0 %640, %v630
          %v642 = vpop.permute.xlu0 %641
          %v643 = vlaneseq
          %v644 = vshrl.u32 %v643, 7
          %v645 = vadd.s32 %v644, 16
          %646 = vset.pattern.permute.xlu0 %v645
          %647 = vperm.xlu0 %646, %v630
          %v648 = vpop.permute.xlu0 %647
          %v649 = vlaneseq
          %v650 = vshrl.u32 %v649, 7
          %v651 = vadd.s32 %v650, 24
          %652 = vset.pattern.permute.xlu0 %v651
          %653 = vperm.xlu0 %652, %v630
          %v654 = vpop.permute.xlu0 %653
          %v655 = vmul.f32 %v636, %v487
          %v656 = vmul.f32 %v642, %v490
          %v657 = vmul.f32 %v648, %v493
          %v658 = vmul.f32 %v654, %v496
          %s659 = scalar_lea.vmem [#allocation2], 64
          %660 = vst.msk [vmem:[%s659] sm:$0xff] %vm582, %v655
          %661 = vst.msk [vmem:[%s659 + $0x8] sm:$0xff] %vm582, %v656
          %662 = vst.msk [vmem:[%s659 + $0x10] sm:$0xff] %vm582, %v657
          %663 = vst.msk [vmem:[%s659 + $0x18] sm:$0xff] %vm582, %v658
          %664 = vrot.lane.b32.xlu0 %v524, 112
          %v665 = vpop.permute.xlu0 %664
          %s667 = scalar_lea.vmem [#allocation3], 16
          %668 = vst.msk [vmem:[%s667] sm:$0xff] %vm582, %v665
          %v669 = vld [vmem:[#allocation14 + $0x3] sm:$0x1]
          %v670 = vperm.slane %v669, 0
          %v671 = vlaneseq
          %v672 = vshrl.u32 %v671, 7
          %674 = vset.pattern.permute.xlu0 %v672
          %675 = vperm.xlu0 %674, %v670
          %v676 = vpop.permute.xlu0 %675
          %v677 = vlaneseq
          %v678 = vshrl.u32 %v677, 7
          %v679 = vadd.s32 %v678, 8
          %680 = vset.pattern.permute.xlu0 %v679
          %681 = vperm.xlu0 %680, %v670
          %v682 = vpop.permute.xlu0 %681
          %v683 = vlaneseq
          %v684 = vshrl.u32 %v683, 7
          %v685 = vadd.s32 %v684, 16
          %686 = vset.pattern.permute.xlu0 %v685
          %687 = vperm.xlu0 %686, %v670
          %v688 = vpop.permute.xlu0 %687
          %v689 = vlaneseq
          %v690 = vshrl.u32 %v689, 7
          %v691 = vadd.s32 %v690, 24
          %692 = vset.pattern.permute.xlu0 %v691
          %693 = vperm.xlu0 %692, %v670
          %v694 = vpop.permute.xlu0 %693
          %v695 = vmul.f32 %v676, %v487
          %v696 = vmul.f32 %v682, %v490
          %v697 = vmul.f32 %v688, %v493
          %v698 = vmul.f32 %v694, %v496
          %s699 = scalar_lea.vmem [#allocation2], 96
          %700 = vst.msk [vmem:[%s699] sm:$0xff] %vm582, %v695
          %701 = vst.msk [vmem:[%s699 + $0x8] sm:$0xff] %vm582, %v696
          %702 = vst.msk [vmem:[%s699 + $0x10] sm:$0xff] %vm582, %v697
          %703 = vst.msk [vmem:[%s699 + $0x18] sm:$0xff] %vm582, %v698
          %704 = vrot.lane.b32.xlu0 %v524, 104
          %v705 = vpop.permute.xlu0 %704
          %s707 = scalar_lea.vmem [#allocation3], 24
          %708 = vst.msk [vmem:[%s707] sm:$0xff] %vm582, %v705
        $region80: #{tpu_custom_call.1} parent=51 // pred_fallthru
          _
        %v709 = vld [vmem:[%s375] sm:$0xff]
        %v710 = vld [vmem:[#allocation10] sm:$0xff]
        %v711 = vld [vmem:[#allocation10 + $0x8] sm:$0xff]
        %v712 = vld [vmem:[#allocation10 + $0x10] sm:$0xff]
        %v713 = vld [vmem:[#allocation10 + $0x18] sm:$0xff]
        %vm714 = vcmask 261120
        %v716 = vsel %vm714, %v709, 0
        %718 = vmatpush.msra.mxu0 0.0
        %719 = vmatpush.msra.mxu0 0.0
        %720 = vmatpush.msra.mxu0 0.0
        %721 = vmatpush.msra.mxu0 0.0
        %722 = vmatpush.msra.mxu0 0.0
        %723 = vmatpush.msra.mxu0 0.0
        %724 = vmatpush.msra.mxu0 0.0
        %725 = vmatpush.msra.mxu0 0.0
        %726 = vmatpush.msra.mxu0 0.0
        %727 = vmatpush.msra.mxu0 0.0
        %728 = vmatpush.msra.mxu0 0.0
        %729 = vmatpush.msra.mxu0 0.0
        %730 = vmatpush.msra.mxu0 %v713
        %731 = vmatpush.msra.mxu0 %v712
        %732 = vmatpush.msra.mxu0 %v711
        %733 = vmatpush.msra.mxu0 %v710
        %734 = vmatmul.f32.gmra.mxu0 %v716
        %v735 = vpop.f32.mrf.mxu0
        %v736 = vadd.f32 0.0, %v735
        %737 = vdwg.mxu0
        %v738 = vld [vmem:[#allocation2] sm:$0xff]
        %v739 = vld [vmem:[#allocation2 + $0x8] sm:$0xff]
        %v740 = vld [vmem:[#allocation2 + $0x10] sm:$0xff]
        %v741 = vld [vmem:[#allocation2 + $0x18] sm:$0xff]
        %v742 = vld [vmem:[#allocation4] sm:$0x1]
        %v743 = vperm.slane %v742, 0
        %v745 = vsel %vm714, %v736, 0
        %747 = vmatpush.msra.mxu0 0.0
        %748 = vmatpush.msra.mxu0 0.0
        %749 = vmatpush.msra.mxu0 0.0
        %750 = vmatpush.msra.mxu0 0.0
        %751 = vmatpush.msra.mxu0 0.0
        %752 = vmatpush.msra.mxu0 0.0
        %753 = vmatpush.msra.mxu0 0.0
        %754 = vmatpush.msra.mxu0 0.0
        %755 = vmatpush.msra.mxu0 0.0
        %756 = vmatpush.msra.mxu0 0.0
        %757 = vmatpush.msra.mxu0 0.0
        %758 = vmatpush.msra.mxu0 0.0
        %759 = vmatpush.msra.mxu0 %v741
        %760 = vmatpush.msra.mxu0 %v740
        %761 = vmatpush.msra.mxu0 %v739
        %762 = vmatpush.msra.mxu0 %v738
        %763 = vmatmul.f32.gmra.mxu0 %v745
        %v764 = vpop.f32.mrf.mxu0
        %v765 = vadd.f32 %v743, %v764
        %766 = vdwg.mxu0
        %vm767 = vcmask 64512
        %v768 = vsel %vm767, %v765, -inf
        %769 = vmax.xlane.f32.xlu0 %v768
        %v770 = vpop.xlane.xlu0 %769
        %v771 = vsub.f32 %v765, %v770
        %v772 = vmul.f32 %v771, 1.442695
        %v773 = vpow.pop %v772
        %v774 = vsel %vm767, %v773, 0.0
        %775 = vadd.xlane.f32.xlu0 %v774
        %v776 = vpop.xlane.xlu0 %775
        %v777 = vld [vmem:[#allocation3] sm:$0xff]
        %v779 = vsel %vm767, %v773, 0
        %781 = vmatpush.msra.mxu0 0.0
        %782 = vmatpush.msra.mxu0 0.0
        %783 = vmatpush.msra.mxu0 0.0
        %784 = vmatpush.msra.mxu0 0.0
        %785 = vmatpush.msra.mxu0 0.0
        %786 = vmatpush.msra.mxu0 0.0
        %787 = vmatpush.msra.mxu0 0.0
        %788 = vmatpush.msra.mxu0 0.0
        %789 = vmatpush.msra.mxu0 0.0
        %790 = vmatpush.msra.mxu0 0.0
        %791 = vmatpush.msra.mxu0 0.0
        %792 = vmatpush.msra.mxu0 0.0
        %793 = vmatpush.msra.mxu0 0.0
        %794 = vmatpush.msra.mxu0 0.0
        %795 = vmatpush.msra.mxu0 0.0
        %796 = vmatpush.msra.mxu0 %v777
        %797 = vmatmul.f32.gmra.mxu0 %v779
        %v798 = vpop.f32.mrf.mxu0
        %v799 = vadd.f32 0.0, %v798
        %800 = vdwg.mxu0
        %v801 = vrcp.pop %v776
        %v802 = vmul.f32 %v776, %v801
        %v803 = vsub.f32 1.0, %v802
        %v804 = vmul.f32 %v801, %v803
        %v805 = vadd.f32 %v801, %v804
        %vm806 = vweird.f32 %v776
        %vm807 = vweird.f32 %v801
        %vm808 = vmor %vm806, %vm807
        %v809 = vsel %vm808, %v801, %v805
        %v810 = vand.u32 2147483647, %v776
        %vm811 = vcmp.eq.f32.partialorder %v810, 8.507059e+37
        %v812 = vand.u32 %v776, 2147483648
        %v813 = vor.u32 1.1754944e-38, %v812
        %v814 = vsel %vm811, %v813, %v809
        %v815 = vmul.f32 %v799, %v814
        %816 = vst.msk [vmem:[%s443] sm:$0xff] %vm767, %v815
        %s817 = scalar_lea.vmem [#allocation2], 32
        %v818 = vld [vmem:[%s817] sm:$0xff]
        %v819 = vld [vmem:[%s817 + $0x8] sm:$0xff]
        %v820 = vld [vmem:[%s817 + $0x10] sm:$0xff]
        %v821 = vld [vmem:[%s817 + $0x18] sm:$0xff]
        %v822 = vld [vmem:[#allocation4 + $0x1] sm:$0x1]
        %v823 = vperm.slane %v822, 0
        %824 = vmatpush.msra.mxu0 0.0
        %825 = vmatpush.msra.mxu0 0.0
        %826 = vmatpush.msra.mxu0 0.0
        %827 = vmatpush.msra.mxu0 0.0
        %828 = vmatpush.msra.mxu0 0.0
        %829 = vmatpush.msra.mxu0 0.0
        %830 = vmatpush.msra.mxu0 0.0
        %831 = vmatpush.msra.mxu0 0.0
        %832 = vmatpush.msra.mxu0 0.0
        %833 = vmatpush.msra.mxu0 0.0
        %834 = vmatpush.msra.mxu0 0.0
        %835 = vmatpush.msra.mxu0 0.0
        %836 = vmatpush.msra.mxu0 %v821
        %837 = vmatpush.msra.mxu0 %v820
        %838 = vmatpush.msra.mxu0 %v819
        %839 = vmatpush.msra.mxu0 %v818
        %840 = vmatmul.f32.gmra.mxu0 %v745
        %v841 = vpop.f32.mrf.mxu0
        %v842 = vadd.f32 %v823, %v841
        %843 = vdwg.mxu0
        %v844 = vsel %vm767, %v842, -inf
        %845 = vmax.xlane.f32.xlu0 %v844
        %v846 = vpop.xlane.xlu0 %845
        %v847 = vsub.f32 %v842, %v846
        %v848 = vmul.f32 %v847, 1.442695
        %v849 = vpow.pop %v848
        %v850 = vsel %vm767, %v849, 0.0
        %851 = vadd.xlane.f32.xlu0 %v850
        %v852 = vpop.xlane.xlu0 %851
        %s853 = scalar_lea.vmem [#allocation3], 8
        %v854 = vld [vmem:[%s853] sm:$0xff]
        %v856 = vsel %vm767, %v849, 0
        %858 = vmatpush.msra.mxu0 0.0
        %859 = vmatpush.msra.mxu0 0.0
        %860 = vmatpush.msra.mxu0 0.0
        %861 = vmatpush.msra.mxu0 0.0
        %862 = vmatpush.msra.mxu0 0.0
        %863 = vmatpush.msra.mxu0 0.0
        %864 = vmatpush.msra.mxu0 0.0
        %865 = vmatpush.msra.mxu0 0.0
        %866 = vmatpush.msra.mxu0 0.0
        %867 = vmatpush.msra.mxu0 0.0
        %868 = vmatpush.msra.mxu0 0.0
        %869 = vmatpush.msra.mxu0 0.0
        %870 = vmatpush.msra.mxu0 0.0
        %871 = vmatpush.msra.mxu0 0.0
        %872 = vmatpush.msra.mxu0 0.0
        %873 = vmatpush.msra.mxu0 %v854
        %874 = vmatmul.f32.gmra.mxu0 %v856
        %v875 = vpop.f32.mrf.mxu0
        %v876 = vadd.f32 0.0, %v875
        %877 = vdwg.mxu0
        %v878 = vrcp.pop %v852
        %v879 = vmul.f32 %v852, %v878
        %v880 = vsub.f32 1.0, %v879
        %v881 = vmul.f32 %v878, %v880
        %v882 = vadd.f32 %v878, %v881
        %vm883 = vweird.f32 %v852
        %vm884 = vweird.f32 %v878
        %vm885 = vmor %vm883, %vm884
        %v886 = vsel %vm885, %v878, %v882
        %v887 = vand.u32 2147483647, %v852
        %vm888 = vcmp.eq.f32.partialorder %v887, 8.507059e+37
        %v889 = vand.u32 %v852, 2147483648
        %v890 = vor.u32 1.1754944e-38, %v889
        %v891 = vsel %vm888, %v890, %v886
        %v892 = vmul.f32 %v876, %v891
        %894 = vrot.lane.b32.xlu0 %v892, 8
        %v895 = vpop.permute.xlu0 %894
        %vm897 = vcmask 130112
        %898 = vst.msk [vmem:[%s443] sm:$0xff] %vm897, %v895
        %s899 = scalar_lea.vmem [#allocation2], 64
        %v900 = vld [vmem:[%s899] sm:$0xff]
        %v901 = vld [vmem:[%s899 + $0x8] sm:$0xff]
        %v902 = vld [vmem:[%s899 + $0x10] sm:$0xff]
        %v903 = vld [vmem:[%s899 + $0x18] sm:$0xff]
        %v904 = vld [vmem:[#allocation4 + $0x2] sm:$0x1]
        %v905 = vperm.slane %v904, 0
        %906 = vmatpush.msra.mxu0 0.0
        %907 = vmatpush.msra.mxu0 0.0
        %908 = vmatpush.msra.mxu0 0.0
        %909 = vmatpush.msra.mxu0 0.0
        %910 = vmatpush.msra.mxu0 0.0
        %911 = vmatpush.msra.mxu0 0.0
        %912 = vmatpush.msra.mxu0 0.0
        %913 = vmatpush.msra.mxu0 0.0
        %914 = vmatpush.msra.mxu0 0.0
        %915 = vmatpush.msra.mxu0 0.0
        %916 = vmatpush.msra.mxu0 0.0
        %917 = vmatpush.msra.mxu0 0.0
        %918 = vmatpush.msra.mxu0 %v903
        %919 = vmatpush.msra.mxu0 %v902
        %920 = vmatpush.msra.mxu0 %v901
        %921 = vmatpush.msra.mxu0 %v900
        %922 = vmatmul.f32.gmra.mxu0 %v745
        %v923 = vpop.f32.mrf.mxu0
        %v924 = vadd.f32 %v905, %v923
        %925 = vdwg.mxu0
        %v926 = vsel %vm767, %v924, -inf
        %927 = vmax.xlane.f32.xlu0 %v926
        %v928 = vpop.xlane.xlu0 %927
        %v929 = vsub.f32 %v924, %v928
        %v930 = vmul.f32 %v929, 1.442695
        %v931 = vpow.pop %v930
        %v932 = vsel %vm767, %v931, 0.0
        %933 = vadd.xlane.f32.xlu0 %v932
        %v934 = vpop.xlane.xlu0 %933
        %s935 = scalar_lea.vmem [#allocation3], 16
        %v936 = vld [vmem:[%s935] sm:$0xff]
        %v938 = vsel %vm767, %v931, 0
        %940 = vmatpush.msra.mxu0 0.0
        %941 = vmatpush.msra.mxu0 0.0
        %942 = vmatpush.msra.mxu0 0.0
        %943 = vmatpush.msra.mxu0 0.0
        %944 = vmatpush.msra.mxu0 0.0
        %945 = vmatpush.msra.mxu0 0.0
        %946 = vmatpush.msra.mxu0 0.0
        %947 = vmatpush.msra.mxu0 0.0
        %948 = vmatpush.msra.mxu0 0.0
        %949 = vmatpush.msra.mxu0 0.0
        %950 = vmatpush.msra.mxu0 0.0
        %951 = vmatpush.msra.mxu0 0.0
        %952 = vmatpush.msra.mxu0 0.0
        %953 = vmatpush.msra.mxu0 0.0
        %954 = vmatpush.msra.mxu0 0.0
        %955 = vmatpush.msra.mxu0 %v936
        %956 = vmatmul.f32.gmra.mxu0 %v938
        %v957 = vpop.f32.mrf.mxu0
        %v958 = vadd.f32 0.0, %v957
        %959 = vdwg.mxu0
        %v960 = vrcp.pop %v934
        %v961 = vmul.f32 %v934, %v960
        %v962 = vsub.f32 1.0, %v961
        %v963 = vmul.f32 %v960, %v962
        %v964 = vadd.f32 %v960, %v963
        %vm965 = vweird.f32 %v934
        %vm966 = vweird.f32 %v960
        %vm967 = vmor %vm965, %vm966
        %v968 = vsel %vm967, %v960, %v964
        %v969 = vand.u32 2147483647, %v934
        %vm970 = vcmp.eq.f32.partialorder %v969, 8.507059e+37
        %v971 = vand.u32 %v934, 2147483648
        %v972 = vor.u32 1.1754944e-38, %v971
        %v973 = vsel %vm970, %v972, %v968
        %v974 = vmul.f32 %v958, %v973
        %976 = vrot.lane.b32.xlu0 %v974, 16
        %v977 = vpop.permute.xlu0 %976
        %vm979 = vcmask 195712
        %980 = vst.msk [vmem:[%s443] sm:$0xff] %vm979, %v977
        %s981 = scalar_lea.vmem [#allocation2], 96
        %v982 = vld [vmem:[%s981] sm:$0xff]
        %v983 = vld [vmem:[%s981 + $0x8] sm:$0xff]
        %v984 = vld [vmem:[%s981 + $0x10] sm:$0xff]
        %v985 = vld [vmem:[%s981 + $0x18] sm:$0xff]
        %v986 = vld [vmem:[#allocation4 + $0x3] sm:$0x1]
        %v987 = vperm.slane %v986, 0
        %988 = vmatpush.msra.mxu0 0.0
        %989 = vmatpush.msra.mxu0 0.0
        %990 = vmatpush.msra.mxu0 0.0
        %991 = vmatpush.msra.mxu0 0.0
        %992 = vmatpush.msra.mxu0 0.0
        %993 = vmatpush.msra.mxu0 0.0
        %994 = vmatpush.msra.mxu0 0.0
        %995 = vmatpush.msra.mxu0 0.0
        %996 = vmatpush.msra.mxu0 0.0
        %997 = vmatpush.msra.mxu0 0.0
        %998 = vmatpush.msra.mxu0 0.0
        %999 = vmatpush.msra.mxu0 0.0
        %1000 = vmatpush.msra.mxu0 %v985
        %1001 = vmatpush.msra.mxu0 %v984
        %1002 = vmatpush.msra.mxu0 %v983
        %1003 = vmatpush.msra.mxu0 %v982
        %1004 = vmatmul.f32.gmra.mxu0 %v745
        %v1005 = vpop.f32.mrf.mxu0
        %v1006 = vadd.f32 %v987, %v1005
        %1007 = vdwg.mxu0
        %v1008 = vsel %vm767, %v1006, -inf
        %1009 = vmax.xlane.f32.xlu0 %v1008
        %v1010 = vpop.xlane.xlu0 %1009
        %v1011 = vsub.f32 %v1006, %v1010
        %v1012 = vmul.f32 %v1011, 1.442695
        %v1013 = vpow.pop %v1012
        %v1014 = vsel %vm767, %v1013, 0.0
        %1015 = vadd.xlane.f32.xlu0 %v1014
        %v1016 = vpop.xlane.xlu0 %1015
        %s1017 = scalar_lea.vmem [#allocation3], 24
        %v1018 = vld [vmem:[%s1017] sm:$0xff]
        %v1020 = vsel %vm767, %v1013, 0
        %1022 = vmatpush.msra.mxu0 0.0
        %1023 = vmatpush.msra.mxu0 0.0
        %1024 = vmatpush.msra.mxu0 0.0
        %1025 = vmatpush.msra.mxu0 0.0
        %1026 = vmatpush.msra.mxu0 0.0
        %1027 = vmatpush.msra.mxu0 0.0
        %1028 = vmatpush.msra.mxu0 0.0
        %1029 = vmatpush.msra.mxu0 0.0
        %1030 = vmatpush.msra.mxu0 0.0
        %1031 = vmatpush.msra.mxu0 0.0
        %1032 = vmatpush.msra.mxu0 0.0
        %1033 = vmatpush.msra.mxu0 0.0
        %1034 = vmatpush.msra.mxu0 0.0
        %1035 = vmatpush.msra.mxu0 0.0
        %1036 = vmatpush.msra.mxu0 0.0
        %1037 = vmatpush.msra.mxu0 %v1018
        %1038 = vmatmul.f32.gmra.mxu0 %v1020
        %v1039 = vpop.f32.mrf.mxu0
        %v1040 = vadd.f32 0.0, %v1039
        %1041 = vdwg.mxu0
        %v1042 = vrcp.pop %v1016
        %v1043 = vmul.f32 %v1016, %v1042
        %v1044 = vsub.f32 1.0, %v1043
        %v1045 = vmul.f32 %v1042, %v1044
        %v1046 = vadd.f32 %v1042, %v1045
        %vm1047 = vweird.f32 %v1016
        %vm1048 = vweird.f32 %v1042
        %vm1049 = vmor %vm1047, %vm1048
        %v1050 = vsel %vm1049, %v1042, %v1046
        %v1051 = vand.u32 2147483647, %v1016
        %vm1052 = vcmp.eq.f32.partialorder %v1051, 8.507059e+37
        %v1053 = vand.u32 %v1016, 2147483648
        %v1054 = vor.u32 1.1754944e-38, %v1053
        %v1055 = vsel %vm1052, %v1054, %v1050
        %v1056 = vmul.f32 %v1040, %v1055
        %1058 = vrot.lane.b32.xlu0 %v1056, 24
        %v1059 = vpop.permute.xlu0 %1058
        %vm1061 = vcmask 261312
        %1062 = vst.msk [vmem:[%s443] sm:$0xff] %vm1061, %v1059
        %s1063 = sand.u32 %s232, 1
        %s1064 = scalar_lea.sflag [#allocation7], %s1063
        %s1065 = sand.u32 %s232, 1
        %s1066 = smul.addr %s1065, 8
        %s1067 = scalar_lea.vmem [#allocation16], %s1066
        // Predicated region
        $region81: #{tpu_custom_call.1} parent=51 // pred_check
          %p1068 = pneg %p242
        $region82: #{tpu_custom_call.1} parent=51 // pred_check_branch
          %1070 = sbr.rel (%p1068) target = $region84
        $region83: #{tpu_custom_call.1} parent=51 // pred_region
          %1072 = vsyncadd %s1064, 0
          %s1073 = smul.addr %s34, 2
          %s1074 = sadd.s32 %s35, %s1073
          %s1075 = smul.addr %s1074, 8
          %s1076 = scalar_lea.hbm %s8, %s1075
          %s1078 = sshll.u32 %s1067, 4
          %s1079 = int_to_ptr.vmem [resolvable:$true] %s1078
          %s1080 = sshll.u32 %s1076, 4
          %s1081 = int_to_ptr.hbm [resolvable:$true] %s1080
          %1083 = dma.vmem_to_hbm [thread:$0]  %s1079, 128, %s1081, %s1064
        $region84: #{tpu_custom_call.1} parent=51 // pred_fallthru
          _
      $region52: #{tpu_custom_call.1} parent=5 // pred_fallthru
        _
      %p1084 = scmp.le.s32.totalorder 2, %s25
      // Predicated region
      $region85: #{tpu_custom_call.1} parent=5 // pred_check
        %p1085 = pneg %p1084
      $region86: #{tpu_custom_call.1} parent=5 // pred_check_branch
        %1087 = sbr.rel (%p1085) target = $region88
      $region87: #{tpu_custom_call.1} parent=5 // pred_region
        %s1088 = ssub.s32 %s25, 2
        // Predicated region
        $region89: #{tpu_custom_call.1} parent=87 // pred_check
          %p1089 = pneg %p248
        $region90: #{tpu_custom_call.1} parent=87 // pred_check_branch
          %1091 = sbr.rel (%p1089) target = $region92
        $region91: #{tpu_custom_call.1} parent=87 // pred_region
          %s1092 = sand.u32 %s233, 1
          %s1093 = scalar_lea.sflag [#allocation7], %s1092
          %s1094 = sand.u32 %s233, 1
          %s1095 = smul.addr %s1094, 8
          %s1096 = scalar_lea.vmem [#allocation16], %s1095
          %1098 = dma.done %s1093, 128
        $region92: #{tpu_custom_call.1} parent=87 // pred_fallthru
          _
      $region88: #{tpu_custom_call.1} parent=5 // pred_fallthru
        _
    $region6: #{tpu_custom_call.1} parent=1 // loop_footer
      %s29 = sadd.s32 1, %s25
    $region7: #{tpu_custom_call.1} parent=1 // loop_footer_branch
      %24 = sbr.rel target = $region3
    $region8: #{tpu_custom_call.1} parent=1 // loop_exit
      _
    %1099 = vsyncpa [#allocation6], 1
    %s1100 = scalar_lea.sflag [#allocation6], 1
    %1101 = vsyncpa %s1100, 1
    %1102 = vsyncpa [#allocation9], 1
    %s1103 = scalar_lea.sflag [#allocation9], 1
    %1104 = vsyncpa %s1103, 1
    %1105 = vsyncpa [#allocation12], 1
    %1106 = vsyncpa [#allocation15], 1
    %1107 = vsyncpa [#allocation7], 1
    %s1108 = scalar_lea.sflag [#allocation7], 1
    %1109 = vsyncpa %s1108, 1

</llo_original>
